<compile_context>
chip_gen: v7x
topology: tpu7x:2x2x1
jax: 0.10.0
libtpu: 0.0.40
codegen_flags: <defaults>
</compile_context>

<pallas_src>
import math
import jax
import jax.numpy as jnp
from jax.experimental import pallas as pl
from jax.experimental.pallas import tpu as pltpu


def gru_fused_kernel(x_ref, wih_ref, bih_ref, whh_ref, bhn_ref, wfc_ref, bfc_ref,
                     out_ref, h_ref):
    """One grid step = one chunk of TC time steps.

    x_ref   : (TC*Bp, I)   bf16, time-major rows (row = t*Bp + b), this chunk
    wih_ref : (I, 3Hp)     bf16, W_ih^T with lane-aligned gate columns [r|z|n]
    bih_ref : (1, 3Hp)     f32, pre-fused biases [b_ir+b_hr | b_iz+b_hz | b_in]
    whh_ref : (Hp, 3Hp)    bf16, merged W_hh^T slab, lane-aligned gate columns
    bhn_ref : (1, Hp)      f32, b_hn (kept separate: multiplied by r)
    wfc_ref : (Hp, O)      bf16, W_fc^T (zero rows beyond H)
    bfc_ref : (1, O)       f32
    out_ref : (Bp, O)      f32 (written on the last chunk only)
    h_ref   : (Bp, Hp)     f32 VMEM scratch, hidden state carried across chunks
    """
    c = pl.program_id(0)

    @pl.when(c == 0)
    def _():
        h_ref[...] = jnp.zeros_like(h_ref)

    tcbp, _ = x_ref.shape
    bp, hp = h_ref.shape
    tc = tcbp // bp

    # --- hoisted input projection: one bf16 MXU matmul over all TC*Bp rows ---
    gi = jnp.dot(x_ref[...], wih_ref[...],
                 preferred_element_type=jnp.float32) + bih_ref[...]      # (TC*Bp, 3Hp) f32

    whh = whh_ref[...]          # (Hp, 3Hp) bf16, loop-invariant
    b_hn = bhn_ref[...]         # (1, Hp) f32

    # --- sequential recurrence, fully unrolled (TC is small & static) ---
    h = h_ref[...]              # (Bp, Hp) f32
    for t in range(tc):
        g = gi[t * bp:(t + 1) * bp, :]                    # sublane-tile-aligned (Bp=8)
        # ONE merged hidden matmul per step; gate split below is lane-tile-aligned.
        s = jnp.dot(h.astype(jnp.bfloat16), whh,
                    preferred_element_type=jnp.float32)   # (Bp, 3Hp) f32
        r = jax.nn.sigmoid(g[:, 0:hp] + s[:, 0:hp])
        z = jax.nn.sigmoid(g[:, hp:2 * hp] + s[:, hp:2 * hp])
        n = jnp.tanh(g[:, 2 * hp:3 * hp] + r * (s[:, 2 * hp:3 * hp] + b_hn))
        h = (1.0 - z) * n + z * h
    h_ref[...] = h

    # --- FC head on the final hidden state, last chunk only ---
    @pl.when(c == pl.num_programs(0) - 1)
    def _():
        out_ref[...] = (jnp.dot(h.astype(jnp.bfloat16), wfc_ref[...],
                                preferred_element_type=jnp.float32)
                        + bfc_ref[...]).astype(out_ref.dtype)


def gru_module_forward(x, w_ih, w_hh, b_ih, b_hh, w_fc, b_fc, *, time_chunk=8):
    """x: (B, T, I). Returns (B, O) = fc(gru(x)[:, -1, :]) with PyTorch GRU semantics."""
    B, T, I = x.shape
    H = w_hh.shape[1]
    O = w_fc.shape[0]

    Hp = ((H + 127) // 128) * 128          # gate width padded to a full lane tile
    Bp = ((B + 7) // 8) * 8                # batch padded to the f32 sublane multiple
    TC = time_chunk if T % time_chunk == 0 else T
    n_chunks = T // TC

    f32, bf16 = jnp.float32, jnp.bfloat16

    def pad2(a, rows, cols):
        return jnp.pad(a, ((0, rows - a.shape[0]), (0, cols - a.shape[1])))

    def pad1(v):
        return jnp.pad(v, (0, Hp - H))

    # --- time-major x, batch padded, flattened: row = t*Bp + b (bf16 MXU input) ---
    # (tiny copy at these shapes; see TODO above for the production-scale alternative)
    x_tm = jnp.transpose(x, (1, 0, 2))                                    # (T, B, I)
    x_tm = jnp.pad(x_tm, ((0, 0), (0, Bp - B), (0, 0)))                   # (T, Bp, I)
    x_flat = x_tm.reshape(T * Bp, I).astype(bf16)                         # (T*Bp, I)

    # --- merged, lane-aligned weight slabs (PyTorch gate order [r, z, n]) ---
    wih = jnp.concatenate(
        [pad2(w_ih[g * H:(g + 1) * H, :].T, I, Hp) for g in range(3)], axis=1
    ).astype(bf16)                                                        # (I, 3Hp)
    whh = jnp.concatenate(
        [pad2(w_hh[g * H:(g + 1) * H, :].T, Hp, Hp) for g in range(3)], axis=1
    ).astype(bf16)                                                        # (Hp, 3Hp)
    wfc = pad2(w_fc.T, Hp, O).astype(bf16)                                # (Hp, O)

    # --- bias pre-fusion (b_hn kept separate: it is multiplied by r) ---
    bih = jnp.concatenate([pad1(b_ih[0:H] + b_hh[0:H]),
                           pad1(b_ih[H:2 * H] + b_hh[H:2 * H]),
                           pad1(b_ih[2 * H:3 * H])]).reshape(1, 3 * Hp).astype(f32)
    bhn = pad1(b_hh[2 * H:3 * H]).reshape(1, Hp).astype(f32)
    bfc = b_fc.reshape(1, O).astype(f32)

    # --- cost estimate + VMEM budget sized from the actual resident set ---
    flops = 2 * T * Bp * I * 3 * Hp + 2 * T * Bp * Hp * 3 * Hp + 2 * Bp * Hp * O
    transcendentals = 3 * T * Bp * Hp
    bytes_accessed = int(x_flat.size * 2 + (wih.size + whh.size + wfc.size) * 2
                         + (bih.size + bhn.size + bfc.size) * 4 + Bp * O * 4)
    resident = (2 * TC * Bp * I * 2                      # double-buffered x chunk (bf16)
                + 2 * (wih.size + whh.size + wfc.size) * 2
                + 2 * (bih.size + bhn.size + bfc.size) * 4
                + 2 * Bp * O * 4
                + Bp * Hp * 4                            # h scratch
                + TC * Bp * 3 * Hp * 4)                  # gi intermediate
    vmem_limit = int(min(max(2 * resident + (2 << 20), 8 << 20), 100 << 20))

    in_specs = [
        pl.BlockSpec((TC * Bp, I), lambda c: (c, 0)),        # x: pipelined per chunk
        pl.BlockSpec((I, 3 * Hp), lambda c: (0, 0)),         # weights/biases: constant
        pl.BlockSpec((1, 3 * Hp), lambda c: (0, 0)),         # block -> DMA'd once
        pl.BlockSpec((Hp, 3 * Hp), lambda c: (0, 0)),
        pl.BlockSpec((1, Hp), lambda c: (0, 0)),
        pl.BlockSpec((Hp, O), lambda c: (0, 0)),
        pl.BlockSpec((1, O), lambda c: (0, 0)),
    ]
    out_specs = pl.BlockSpec((Bp, O), lambda c: (0, 0))

    out = pl.pallas_call(
        gru_fused_kernel,
        out_shape=jax.ShapeDtypeStruct((Bp, O), f32),
        grid_spec=pltpu.PrefetchScalarGridSpec(
            num_scalar_prefetch=0,
            grid=(n_chunks,),
            in_specs=in_specs,
            out_specs=out_specs,
            scratch_shapes=[pltpu.VMEM((Bp, Hp), f32)],
        ),
        compiler_params=pltpu.CompilerParams(
            dimension_semantics=("arbitrary",),           # recurrence: must stay serial
            vmem_limit_bytes=vmem_limit),
        cost_estimate=pl.CostEstimate(flops=flops,
                                      transcendentals=transcendentals,
                                      bytes_accessed=bytes_accessed),
    )(x_flat, wih, bih, whh, bhn, wfc, bfc)
    return out[:B, :]


def gru_module_reference(x, w_ih, w_hh, b_ih, b_hh, w_fc, b_fc):
    """Pure-JAX f32 reference matching torch.nn.GRU + Linear semantics."""
    B, T, I = x.shape
    H = w_hh.shape[1]

    def step(h, x_t):
        gi = x_t @ w_ih.T + b_ih
        gh = h @ w_hh.T + b_hh
        i_r, i_z, i_n = gi[:, :H], gi[:, H:2 * H], gi[:, 2 * H:]
        h_r, h_z, h_n = gh[:, :H], gh[:, H:2 * H], gh[:, 2 * H:]
        r = jax.nn.sigmoid(i_r + h_r)
        z = jax.nn.sigmoid(i_z + h_z)
        n = jnp.tanh(i_n + r * h_n)
        h_new = (1.0 - z) * n + z * h
        return h_new, h_new

    h0 = jnp.zeros((B, H), jnp.float32)
    h_last, _ = jax.lax.scan(step, h0, jnp.transpose(x, (1, 0, 2)))
    return h_last @ w_fc.T + b_fc


if __name__ == "__main__":
    # Small shapes consistent with the module: batch=2, seq=8, input=8, hidden=32, output=4.
    B, T, I, H, O = 2, 8, 8, 32, 4

    key = jax.random.PRNGKey(0)
    ks = jax.random.split(key, 8)
    bound_gru = 1.0 / math.sqrt(H)      # PyTorch GRU init: U(-1/sqrt(H), 1/sqrt(H))
    bound_fc = 1.0 / math.sqrt(H)       # PyTorch Linear init bound

    w_ih = jax.random.uniform(ks[0], (3 * H, I), jnp.float32, -bound_gru, bound_gru)
    w_hh = jax.random.uniform(ks[1], (3 * H, H), jnp.float32, -bound_gru, bound_gru)
    b_ih = jax.random.uniform(ks[2], (3 * H,), jnp.float32, -bound_gru, bound_gru)
    b_hh = jax.random.uniform(ks[3], (3 * H,), jnp.float32, -bound_gru, bound_gru)
    w_fc = jax.random.uniform(ks[4], (O, H), jnp.float32, -bound_fc, bound_fc)
    b_fc = jax.random.uniform(ks[5], (O,), jnp.float32, -bound_fc, bound_fc)

    x = jax.random.normal(ks[6], (B, T, I), jnp.float32)

    out = gru_module_forward(x, w_ih, w_hh, b_ih, b_hh, w_fc, b_fc)
    out = jax.block_until_ready(out)

    ref = gru_module_reference(x, w_ih, w_hh, b_ih, b_hh, w_fc, b_fc)
    assert out.shape == (B, O)
    # bf16 MXU inputs (f32 accumulation / gate math) -> relaxed tolerance vs f32 reference.
    assert jnp.allclose(out, ref, atol=2e-2, rtol=2e-2), (out, ref)

    print("KERNEL_OK")
</pallas_src>

<mosaic_0001>
module attributes {stable_mosaic.version = 11 : i64} {
  func.func @gru_fused_kernel(%arg0: i32, %arg1: memref<64x8xbf16, #tpu.memory_space<vmem>>, %arg2: memref<8x384xbf16, #tpu.memory_space<vmem>>, %arg3: memref<1x384xf32, #tpu.memory_space<vmem>>, %arg4: memref<128x384xbf16, #tpu.memory_space<vmem>>, %arg5: memref<1x128xf32, #tpu.memory_space<vmem>>, %arg6: memref<128x4xbf16, #tpu.memory_space<vmem>>, %arg7: memref<1x4xf32, #tpu.memory_space<vmem>>, %arg8: memref<8x4xf32, #tpu.memory_space<vmem>>, %arg9: memref<8x128xf32, #tpu.memory_space<vmem>>) attributes {dimension_semantics = [#tpu.dimension_semantics<arbitrary>], iteration_bounds = array<i64: 1>, scalar_prefetch = 0 : i64, scratch_operands = 1 : i64, tpu.core_type = #tpu.core_type<tc>, window_params = [{transform_indices = @transform_0, window_bounds = array<i64: 64, 8>}, {pipeline_mode = #tpu.pipeline_mode<synchronous>, transform_indices = @transform_1, window_bounds = array<i64: 8, 384>}, {pipeline_mode = #tpu.pipeline_mode<synchronous>, transform_indices = @transform_2, window_bounds = array<i64: 1, 384>}, {pipeline_mode = #tpu.pipeline_mode<synchronous>, transform_indices = @transform_3, window_bounds = array<i64: 128, 384>}, {pipeline_mode = #tpu.pipeline_mode<synchronous>, transform_indices = @transform_4, window_bounds = array<i64: 1, 128>}, {pipeline_mode = #tpu.pipeline_mode<synchronous>, transform_indices = @transform_5, window_bounds = array<i64: 128, 4>}, {pipeline_mode = #tpu.pipeline_mode<synchronous>, transform_indices = @transform_6, window_bounds = array<i64: 1, 4>}, {pipeline_mode = #tpu.pipeline_mode<synchronous>, transform_indices = @transform_7, window_bounds = array<i64: 8, 4>}]} {
    %c0_i32 = arith.constant 0 : i32
    %0 = arith.cmpi eq, %arg0, %c0_i32 : i32
    %1 = arith.extui %0 : i1 to i32
    %c0_i32_0 = arith.constant 0 : i32
    %2 = arith.cmpi ne, %1, %c0_i32_0 : i32
    scf.if %2 {
      %cst_48 = arith.constant 0.000000e+00 : f32
      %264 = vector.broadcast %cst_48 : f32 to vector<8x128xf32>
      %c0_49 = arith.constant 0 : index
      %c0_50 = arith.constant 0 : index
      %265 = vector.load %arg9[%c0_49, %c0_50] : memref<8x128xf32, #tpu.memory_space<vmem>>, vector<8x128xf32>
      tpu.vector_store %arg9[%c0_49, %c0_50], %264 {strides = array<i32>} : memref<8x128xf32, #tpu.memory_space<vmem>>, vector<8x128xf32>,
    } else {
    }
    %c0 = arith.constant 0 : index
    %c0_1 = arith.constant 0 : index
    %3 = vector.load %arg1[%c0, %c0_1] : memref<64x8xbf16, #tpu.memory_space<vmem>>, vector<64x8xbf16>
    %c0_2 = arith.constant 0 : index
    %c0_3 = arith.constant 0 : index
    %4 = vector.load %arg2[%c0_2, %c0_3] : memref<8x384xbf16, #tpu.memory_space<vmem>>, vector<8x384xbf16>
    %cst = arith.constant dense<0.000000e+00> : vector<64x384xf32>
    %5 = tpu.matmul %3, %4, %cst {dimension_numbers = #tpu.dot_dimension_numbers<[1], [0], [0], [1], [0, 0, 1, 1], [], []>} : vector<64x8xbf16>, vector<8x384xbf16>, vector<64x384xf32> -> vector<64x384xf32>
    %c0_4 = arith.constant 0 : index
    %c0_5 = arith.constant 0 : index
    %6 = vector.load %arg3[%c0_4, %c0_5] : memref<1x384xf32, #tpu.memory_space<vmem>>, vector<1x384xf32>
    %7 = vector.broadcast %6 : vector<1x384xf32> to vector<64x384xf32>
    %8 = arith.addf %5, %7 : vector<64x384xf32>
    %c0_6 = arith.constant 0 : index
    %c0_7 = arith.constant 0 : index
    %9 = vector.load %arg4[%c0_6, %c0_7] : memref<128x384xbf16, #tpu.memory_space<vmem>>, vector<128x384xbf16>
    %c0_8 = arith.constant 0 : index
    %c0_9 = arith.constant 0 : index
    %10 = vector.load %arg5[%c0_8, %c0_9] : memref<1x128xf32, #tpu.memory_space<vmem>>, vector<1x128xf32>
    %c0_10 = arith.constant 0 : index
    %c0_11 = arith.constant 0 : index
    %11 = vector.load %arg9[%c0_10, %c0_11] : memref<8x128xf32, #tpu.memory_space<vmem>>, vector<8x128xf32>
    %12 = vector.extract_strided_slice %8 {offsets = [0, 0], sizes = [8, 384], strides = [1, 1]} : vector<64x384xf32> to vector<8x384xf32>
    %13 = arith.truncf %11 : vector<8x128xf32> to vector<8x128xbf16>
    %cst_12 = arith.constant dense<0.000000e+00> : vector<8x384xf32>
    %14 = tpu.matmul %13, %9, %cst_12 {dimension_numbers = #tpu.dot_dimension_numbers<[1], [0], [0], [1], [0, 0, 1, 1], [], []>} : vector<8x128xbf16>, vector<128x384xbf16>, vector<8x384xf32> -> vector<8x384xf32>
    %15 = vector.extract_strided_slice %12 {offsets = [0, 0], sizes = [8, 128], strides = [1, 1]} : vector<8x384xf32> to vector<8x128xf32>
    %16 = vector.extract_strided_slice %14 {offsets = [0, 0], sizes = [8, 128], strides = [1, 1]} : vector<8x384xf32> to vector<8x128xf32>
    %17 = arith.addf %15, %16 : vector<8x128xf32>
    %18 = arith.negf %17 : vector<8x128xf32>
    %19 = math.exp %18 : vector<8x128xf32>
    %cst_13 = arith.constant 1.000000e+00 : f32
    %20 = vector.broadcast %cst_13 : f32 to vector<8x128xf32>
    %21 = arith.addf %20, %19 : vector<8x128xf32>
    %22 = arith.divf %20, %21 : vector<8x128xf32>
    %23 = vector.extract_strided_slice %12 {offsets = [0, 128], sizes = [8, 128], strides = [1, 1]} : vector<8x384xf32> to vector<8x128xf32>
    %24 = vector.extract_strided_slice %14 {offsets = [0, 128], sizes = [8, 128], strides = [1, 1]} : vector<8x384xf32> to vector<8x128xf32>
    %25 = arith.addf %23, %24 : vector<8x128xf32>
    %26 = arith.negf %25 : vector<8x128xf32>
    %27 = math.exp %26 : vector<8x128xf32>
    %cst_14 = arith.constant 1.000000e+00 : f32
    %28 = vector.broadcast %cst_14 : f32 to vector<8x128xf32>
    %29 = arith.addf %28, %27 : vector<8x128xf32>
    %30 = arith.divf %28, %29 : vector<8x128xf32>
    %31 = vector.extract_strided_slice %12 {offsets = [0, 256], sizes = [8, 128], strides = [1, 1]} : vector<8x384xf32> to vector<8x128xf32>
    %32 = vector.extract_strided_slice %14 {offsets = [0, 256], sizes = [8, 128], strides = [1, 1]} : vector<8x384xf32> to vector<8x128xf32>
    %33 = vector.broadcast %10 : vector<1x128xf32> to vector<8x128xf32>
    %34 = arith.addf %32, %33 : vector<8x128xf32>
    %35 = arith.mulf %22, %34 : vector<8x128xf32>
    %36 = arith.addf %31, %35 : vector<8x128xf32>
    %37 = math.tanh %36 : vector<8x128xf32>
    %cst_15 = arith.constant 1.000000e+00 : f32
    %38 = vector.broadcast %cst_15 : f32 to vector<8x128xf32>
    %39 = arith.subf %38, %30 : vector<8x128xf32>
    %40 = arith.mulf %39, %37 : vector<8x128xf32>
    %41 = arith.mulf %30, %11 : vector<8x128xf32>
    %42 = arith.addf %40, %41 : vector<8x128xf32>
    %43 = vector.extract_strided_slice %8 {offsets = [8, 0], sizes = [8, 384], strides = [1, 1]} : vector<64x384xf32> to vector<8x384xf32>
    %44 = arith.truncf %42 : vector<8x128xf32> to vector<8x128xbf16>
    %cst_16 = arith.constant dense<0.000000e+00> : vector<8x384xf32>
    %45 = tpu.matmul %44, %9, %cst_16 {dimension_numbers = #tpu.dot_dimension_numbers<[1], [0], [0], [1], [0, 0, 1, 1], [], []>} : vector<8x128xbf16>, vector<128x384xbf16>, vector<8x384xf32> -> vector<8x384xf32>
    %46 = vector.extract_strided_slice %43 {offsets = [0, 0], sizes = [8, 128], strides = [1, 1]} : vector<8x384xf32> to vector<8x128xf32>
    %47 = vector.extract_strided_slice %45 {offsets = [0, 0], sizes = [8, 128], strides = [1, 1]} : vector<8x384xf32> to vector<8x128xf32>
    %48 = arith.addf %46, %47 : vector<8x128xf32>
    %49 = arith.negf %48 : vector<8x128xf32>
    %50 = math.exp %49 : vector<8x128xf32>
    %cst_17 = arith.constant 1.000000e+00 : f32
    %51 = vector.broadcast %cst_17 : f32 to vector<8x128xf32>
    %52 = arith.addf %51, %50 : vector<8x128xf32>
    %53 = arith.divf %51, %52 : vector<8x128xf32>
    %54 = vector.extract_strided_slice %43 {offsets = [0, 128], sizes = [8, 128], strides = [1, 1]} : vector<8x384xf32> to vector<8x128xf32>
    %55 = vector.extract_strided_slice %45 {offsets = [0, 128], sizes = [8, 128], strides = [1, 1]} : vector<8x384xf32> to vector<8x128xf32>
    %56 = arith.addf %54, %55 : vector<8x128xf32>
    %57 = arith.negf %56 : vector<8x128xf32>
    %58 = math.exp %57 : vector<8x128xf32>
    %cst_18 = arith.constant 1.000000e+00 : f32
    %59 = vector.broadcast %cst_18 : f32 to vector<8x128xf32>
    %60 = arith.addf %59, %58 : vector<8x128xf32>
    %61 = arith.divf %59, %60 : vector<8x128xf32>
    %62 = vector.extract_strided_slice %43 {offsets = [0, 256], sizes = [8, 128], strides = [1, 1]} : vector<8x384xf32> to vector<8x128xf32>
    %63 = vector.extract_strided_slice %45 {offsets = [0, 256], sizes = [8, 128], strides = [1, 1]} : vector<8x384xf32> to vector<8x128xf32>
    %64 = vector.broadcast %10 : vector<1x128xf32> to vector<8x128xf32>
    %65 = arith.addf %63, %64 : vector<8x128xf32>
    %66 = arith.mulf %53, %65 : vector<8x128xf32>
    %67 = arith.addf %62, %66 : vector<8x128xf32>
    %68 = math.tanh %67 : vector<8x128xf32>
    %cst_19 = arith.constant 1.000000e+00 : f32
    %69 = vector.broadcast %cst_19 : f32 to vector<8x128xf32>
    %70 = arith.subf %69, %61 : vector<8x128xf32>
    %71 = arith.mulf %70, %68 : vector<8x128xf32>
    %72 = arith.mulf %61, %42 : vector<8x128xf32>
    %73 = arith.addf %71, %72 : vector<8x128xf32>
    %74 = vector.extract_strided_slice %8 {offsets = [16, 0], sizes = [8, 384], strides = [1, 1]} : vector<64x384xf32> to vector<8x384xf32>
    %75 = arith.truncf %73 : vector<8x128xf32> to vector<8x128xbf16>
    %cst_20 = arith.constant dense<0.000000e+00> : vector<8x384xf32>
    %76 = tpu.matmul %75, %9, %cst_20 {dimension_numbers = #tpu.dot_dimension_numbers<[1], [0], [0], [1], [0, 0, 1, 1], [], []>} : vector<8x128xbf16>, vector<128x384xbf16>, vector<8x384xf32> -> vector<8x384xf32>
    %77 = vector.extract_strided_slice %74 {offsets = [0, 0], sizes = [8, 128], strides = [1, 1]} : vector<8x384xf32> to vector<8x128xf32>
    %78 = vector.extract_strided_slice %76 {offsets = [0, 0], sizes = [8, 128], strides = [1, 1]} : vector<8x384xf32> to vector<8x128xf32>
    %79 = arith.addf %77, %78 : vector<8x128xf32>
    %80 = arith.negf %79 : vector<8x128xf32>
    %81 = math.exp %80 : vector<8x128xf32>
    %cst_21 = arith.constant 1.000000e+00 : f32
    %82 = vector.broadcast %cst_21 : f32 to vector<8x128xf32>
    %83 = arith.addf %82, %81 : vector<8x128xf32>
    %84 = arith.divf %82, %83 : vector<8x128xf32>
    %85 = vector.extract_strided_slice %74 {offsets = [0, 128], sizes = [8, 128], strides = [1, 1]} : vector<8x384xf32> to vector<8x128xf32>
    %86 = vector.extract_strided_slice %76 {offsets = [0, 128], sizes = [8, 128], strides = [1, 1]} : vector<8x384xf32> to vector<8x128xf32>
    %87 = arith.addf %85, %86 : vector<8x128xf32>
    %88 = arith.negf %87 : vector<8x128xf32>
    %89 = math.exp %88 : vector<8x128xf32>
    %cst_22 = arith.constant 1.000000e+00 : f32
    %90 = vector.broadcast %cst_22 : f32 to vector<8x128xf32>
    %91 = arith.addf %90, %89 : vector<8x128xf32>
    %92 = arith.divf %90, %91 : vector<8x128xf32>
    %93 = vector.extract_strided_slice %74 {offsets = [0, 256], sizes = [8, 128], strides = [1, 1]} : vector<8x384xf32> to vector<8x128xf32>
    %94 = vector.extract_strided_slice %76 {offsets = [0, 256], sizes = [8, 128], strides = [1, 1]} : vector<8x384xf32> to vector<8x128xf32>
    %95 = vector.broadcast %10 : vector<1x128xf32> to vector<8x128xf32>
    %96 = arith.addf %94, %95 : vector<8x128xf32>
    %97 = arith.mulf %84, %96 : vector<8x128xf32>
    %98 = arith.addf %93, %97 : vector<8x128xf32>
    %99 = math.tanh %98 : vector<8x128xf32>
    %cst_23 = arith.constant 1.000000e+00 : f32
    %100 = vector.broadcast %cst_23 : f32 to vector<8x128xf32>
    %101 = arith.subf %100, %92 : vector<8x128xf32>
    %102 = arith.mulf %101, %99 : vector<8x128xf32>
    %103 = arith.mulf %92, %73 : vector<8x128xf32>
    %104 = arith.addf %102, %103 : vector<8x128xf32>
    %105 = vector.extract_strided_slice %8 {offsets = [24, 0], sizes = [8, 384], strides = [1, 1]} : vector<64x384xf32> to vector<8x384xf32>
    %106 = arith.truncf %104 : vector<8x128xf32> to vector<8x128xbf16>
    %cst_24 = arith.constant dense<0.000000e+00> : vector<8x384xf32>
    %107 = tpu.matmul %106, %9, %cst_24 {dimension_numbers = #tpu.dot_dimension_numbers<[1], [0], [0], [1], [0, 0, 1, 1], [], []>} : vector<8x128xbf16>, vector<128x384xbf16>, vector<8x384xf32> -> vector<8x384xf32>
    %108 = vector.extract_strided_slice %105 {offsets = [0, 0], sizes = [8, 128], strides = [1, 1]} : vector<8x384xf32> to vector<8x128xf32>
    %109 = vector.extract_strided_slice %107 {offsets = [0, 0], sizes = [8, 128], strides = [1, 1]} : vector<8x384xf32> to vector<8x128xf32>
    %110 = arith.addf %108, %109 : vector<8x128xf32>
    %111 = arith.negf %110 : vector<8x128xf32>
    %112 = math.exp %111 : vector<8x128xf32>
    %cst_25 = arith.constant 1.000000e+00 : f32
    %113 = vector.broadcast %cst_25 : f32 to vector<8x128xf32>
    %114 = arith.addf %113, %112 : vector<8x128xf32>
    %115 = arith.divf %113, %114 : vector<8x128xf32>
    %116 = vector.extract_strided_slice %105 {offsets = [0, 128], sizes = [8, 128], strides = [1, 1]} : vector<8x384xf32> to vector<8x128xf32>
    %117 = vector.extract_strided_slice %107 {offsets = [0, 128], sizes = [8, 128], strides = [1, 1]} : vector<8x384xf32> to vector<8x128xf32>
    %118 = arith.addf %116, %117 : vector<8x128xf32>
    %119 = arith.negf %118 : vector<8x128xf32>
    %120 = math.exp %119 : vector<8x128xf32>
    %cst_26 = arith.constant 1.000000e+00 : f32
    %121 = vector.broadcast %cst_26 : f32 to vector<8x128xf32>
    %122 = arith.addf %121, %120 : vector<8x128xf32>
    %123 = arith.divf %121, %122 : vector<8x128xf32>
    %124 = vector.extract_strided_slice %105 {offsets = [0, 256], sizes = [8, 128], strides = [1, 1]} : vector<8x384xf32> to vector<8x128xf32>
    %125 = vector.extract_strided_slice %107 {offsets = [0, 256], sizes = [8, 128], strides = [1, 1]} : vector<8x384xf32> to vector<8x128xf32>
    %126 = vector.broadcast %10 : vector<1x128xf32> to vector<8x128xf32>
    %127 = arith.addf %125, %126 : vector<8x128xf32>
    %128 = arith.mulf %115, %127 : vector<8x128xf32>
    %129 = arith.addf %124, %128 : vector<8x128xf32>
    %130 = math.tanh %129 : vector<8x128xf32>
    %cst_27 = arith.constant 1.000000e+00 : f32
    %131 = vector.broadcast %cst_27 : f32 to vector<8x128xf32>
    %132 = arith.subf %131, %123 : vector<8x128xf32>
    %133 = arith.mulf %132, %130 : vector<8x128xf32>
    %134 = arith.mulf %123, %104 : vector<8x128xf32>
    %135 = arith.addf %133, %134 : vector<8x128xf32>
    %136 = vector.extract_strided_slice %8 {offsets = [32, 0], sizes = [8, 384], strides = [1, 1]} : vector<64x384xf32> to vector<8x384xf32>
    %137 = arith.truncf %135 : vector<8x128xf32> to vector<8x128xbf16>
    %cst_28 = arith.constant dense<0.000000e+00> : vector<8x384xf32>
    %138 = tpu.matmul %137, %9, %cst_28 {dimension_numbers = #tpu.dot_dimension_numbers<[1], [0], [0], [1], [0, 0, 1, 1], [], []>} : vector<8x128xbf16>, vector<128x384xbf16>, vector<8x384xf32> -> vector<8x384xf32>
    %139 = vector.extract_strided_slice %136 {offsets = [0, 0], sizes = [8, 128], strides = [1, 1]} : vector<8x384xf32> to vector<8x128xf32>
    %140 = vector.extract_strided_slice %138 {offsets = [0, 0], sizes = [8, 128], strides = [1, 1]} : vector<8x384xf32> to vector<8x128xf32>
    %141 = arith.addf %139, %140 : vector<8x128xf32>
    %142 = arith.negf %141 : vector<8x128xf32>
    %143 = math.exp %142 : vector<8x128xf32>
    %cst_29 = arith.constant 1.000000e+00 : f32
    %144 = vector.broadcast %cst_29 : f32 to vector<8x128xf32>
    %145 = arith.addf %144, %143 : vector<8x128xf32>
    %146 = arith.divf %144, %145 : vector<8x128xf32>
    %147 = vector.extract_strided_slice %136 {offsets = [0, 128], sizes = [8, 128], strides = [1, 1]} : vector<8x384xf32> to vector<8x128xf32>
    %148 = vector.extract_strided_slice %138 {offsets = [0, 128], sizes = [8, 128], strides = [1, 1]} : vector<8x384xf32> to vector<8x128xf32>
    %149 = arith.addf %147, %148 : vector<8x128xf32>
    %150 = arith.negf %149 : vector<8x128xf32>
    %151 = math.exp %150 : vector<8x128xf32>
    %cst_30 = arith.constant 1.000000e+00 : f32
    %152 = vector.broadcast %cst_30 : f32 to vector<8x128xf32>
    %153 = arith.addf %152, %151 : vector<8x128xf32>
    %154 = arith.divf %152, %153 : vector<8x128xf32>
    %155 = vector.extract_strided_slice %136 {offsets = [0, 256], sizes = [8, 128], strides = [1, 1]} : vector<8x384xf32> to vector<8x128xf32>
    %156 = vector.extract_strided_slice %138 {offsets = [0, 256], sizes = [8, 128], strides = [1, 1]} : vector<8x384xf32> to vector<8x128xf32>
    %157 = vector.broadcast %10 : vector<1x128xf32> to vector<8x128xf32>
    %158 = arith.addf %156, %157 : vector<8x128xf32>
    %159 = arith.mulf %146, %158 : vector<8x128xf32>
    %160 = arith.addf %155, %159 : vector<8x128xf32>
    %161 = math.tanh %160 : vector<8x128xf32>
    %cst_31 = arith.constant 1.000000e+00 : f32
    %162 = vector.broadcast %cst_31 : f32 to vector<8x128xf32>
    %163 = arith.subf %162, %154 : vector<8x128xf32>
    %164 = arith.mulf %163, %161 : vector<8x128xf32>
    %165 = arith.mulf %154, %135 : vector<8x128xf32>
    %166 = arith.addf %164, %165 : vector<8x128xf32>
    %167 = vector.extract_strided_slice %8 {offsets = [40, 0], sizes = [8, 384], strides = [1, 1]} : vector<64x384xf32> to vector<8x384xf32>
    %168 = arith.truncf %166 : vector<8x128xf32> to vector<8x128xbf16>
    %cst_32 = arith.constant dense<0.000000e+00> : vector<8x384xf32>
    %169 = tpu.matmul %168, %9, %cst_32 {dimension_numbers = #tpu.dot_dimension_numbers<[1], [0], [0], [1], [0, 0, 1, 1], [], []>} : vector<8x128xbf16>, vector<128x384xbf16>, vector<8x384xf32> -> vector<8x384xf32>
    %170 = vector.extract_strided_slice %167 {offsets = [0, 0], sizes = [8, 128], strides = [1, 1]} : vector<8x384xf32> to vector<8x128xf32>
    %171 = vector.extract_strided_slice %169 {offsets = [0, 0], sizes = [8, 128], strides = [1, 1]} : vector<8x384xf32> to vector<8x128xf32>
    %172 = arith.addf %170, %171 : vector<8x128xf32>
    %173 = arith.negf %172 : vector<8x128xf32>
    %174 = math.exp %173 : vector<8x128xf32>
    %cst_33 = arith.constant 1.000000e+00 : f32
    %175 = vector.broadcast %cst_33 : f32 to vector<8x128xf32>
    %176 = arith.addf %175, %174 : vector<8x128xf32>
    %177 = arith.divf %175, %176 : vector<8x128xf32>
    %178 = vector.extract_strided_slice %167 {offsets = [0, 128], sizes = [8, 128], strides = [1, 1]} : vector<8x384xf32> to vector<8x128xf32>
    %179 = vector.extract_strided_slice %169 {offsets = [0, 128], sizes = [8, 128], strides = [1, 1]} : vector<8x384xf32> to vector<8x128xf32>
    %180 = arith.addf %178, %179 : vector<8x128xf32>
    %181 = arith.negf %180 : vector<8x128xf32>
    %182 = math.exp %181 : vector<8x128xf32>
    %cst_34 = arith.constant 1.000000e+00 : f32
    %183 = vector.broadcast %cst_34 : f32 to vector<8x128xf32>
    %184 = arith.addf %183, %182 : vector<8x128xf32>
    %185 = arith.divf %183, %184 : vector<8x128xf32>
    %186 = vector.extract_strided_slice %167 {offsets = [0, 256], sizes = [8, 128], strides = [1, 1]} : vector<8x384xf32> to vector<8x128xf32>
    %187 = vector.extract_strided_slice %169 {offsets = [0, 256], sizes = [8, 128], strides = [1, 1]} : vector<8x384xf32> to vector<8x128xf32>
    %188 = vector.broadcast %10 : vector<1x128xf32> to vector<8x128xf32>
    %189 = arith.addf %187, %188 : vector<8x128xf32>
    %190 = arith.mulf %177, %189 : vector<8x128xf32>
    %191 = arith.addf %186, %190 : vector<8x128xf32>
    %192 = math.tanh %191 : vector<8x128xf32>
    %cst_35 = arith.constant 1.000000e+00 : f32
    %193 = vector.broadcast %cst_35 : f32 to vector<8x128xf32>
    %194 = arith.subf %193, %185 : vector<8x128xf32>
    %195 = arith.mulf %194, %192 : vector<8x128xf32>
    %196 = arith.mulf %185, %166 : vector<8x128xf32>
    %197 = arith.addf %195, %196 : vector<8x128xf32>
    %198 = vector.extract_strided_slice %8 {offsets = [48, 0], sizes = [8, 384], strides = [1, 1]} : vector<64x384xf32> to vector<8x384xf32>
    %199 = arith.truncf %197 : vector<8x128xf32> to vector<8x128xbf16>
    %cst_36 = arith.constant dense<0.000000e+00> : vector<8x384xf32>
    %200 = tpu.matmul %199, %9, %cst_36 {dimension_numbers = #tpu.dot_dimension_numbers<[1], [0], [0], [1], [0, 0, 1, 1], [], []>} : vector<8x128xbf16>, vector<128x384xbf16>, vector<8x384xf32> -> vector<8x384xf32>
    %201 = vector.extract_strided_slice %198 {offsets = [0, 0], sizes = [8, 128], strides = [1, 1]} : vector<8x384xf32> to vector<8x128xf32>
    %202 = vector.extract_strided_slice %200 {offsets = [0, 0], sizes = [8, 128], strides = [1, 1]} : vector<8x384xf32> to vector<8x128xf32>
    %203 = arith.addf %201, %202 : vector<8x128xf32>
    %204 = arith.negf %203 : vector<8x128xf32>
    %205 = math.exp %204 : vector<8x128xf32>
    %cst_37 = arith.constant 1.000000e+00 : f32
    %206 = vector.broadcast %cst_37 : f32 to vector<8x128xf32>
    %207 = arith.addf %206, %205 : vector<8x128xf32>
    %208 = arith.divf %206, %207 : vector<8x128xf32>
    %209 = vector.extract_strided_slice %198 {offsets = [0, 128], sizes = [8, 128], strides = [1, 1]} : vector<8x384xf32> to vector<8x128xf32>
    %210 = vector.extract_strided_slice %200 {offsets = [0, 128], sizes = [8, 128], strides = [1, 1]} : vector<8x384xf32> to vector<8x128xf32>
    %211 = arith.addf %209, %210 : vector<8x128xf32>
    %212 = arith.negf %211 : vector<8x128xf32>
    %213 = math.exp %212 : vector<8x128xf32>
    %cst_38 = arith.constant 1.000000e+00 : f32
    %214 = vector.broadcast %cst_38 : f32 to vector<8x128xf32>
    %215 = arith.addf %214, %213 : vector<8x128xf32>
    %216 = arith.divf %214, %215 : vector<8x128xf32>
    %217 = vector.extract_strided_slice %198 {offsets = [0, 256], sizes = [8, 128], strides = [1, 1]} : vector<8x384xf32> to vector<8x128xf32>
    %218 = vector.extract_strided_slice %200 {offsets = [0, 256], sizes = [8, 128], strides = [1, 1]} : vector<8x384xf32> to vector<8x128xf32>
    %219 = vector.broadcast %10 : vector<1x128xf32> to vector<8x128xf32>
    %220 = arith.addf %218, %219 : vector<8x128xf32>
    %221 = arith.mulf %208, %220 : vector<8x128xf32>
    %222 = arith.addf %217, %221 : vector<8x128xf32>
    %223 = math.tanh %222 : vector<8x128xf32>
    %cst_39 = arith.constant 1.000000e+00 : f32
    %224 = vector.broadcast %cst_39 : f32 to vector<8x128xf32>
    %225 = arith.subf %224, %216 : vector<8x128xf32>
    %226 = arith.mulf %225, %223 : vector<8x128xf32>
    %227 = arith.mulf %216, %197 : vector<8x128xf32>
    %228 = arith.addf %226, %227 : vector<8x128xf32>
    %229 = vector.extract_strided_slice %8 {offsets = [56, 0], sizes = [8, 384], strides = [1, 1]} : vector<64x384xf32> to vector<8x384xf32>
    %230 = arith.truncf %228 : vector<8x128xf32> to vector<8x128xbf16>
    %cst_40 = arith.constant dense<0.000000e+00> : vector<8x384xf32>
    %231 = tpu.matmul %230, %9, %cst_40 {dimension_numbers = #tpu.dot_dimension_numbers<[1], [0], [0], [1], [0, 0, 1, 1], [], []>} : vector<8x128xbf16>, vector<128x384xbf16>, vector<8x384xf32> -> vector<8x384xf32>
    %232 = vector.extract_strided_slice %229 {offsets = [0, 0], sizes = [8, 128], strides = [1, 1]} : vector<8x384xf32> to vector<8x128xf32>
    %233 = vector.extract_strided_slice %231 {offsets = [0, 0], sizes = [8, 128], strides = [1, 1]} : vector<8x384xf32> to vector<8x128xf32>
    %234 = arith.addf %232, %233 : vector<8x128xf32>
    %235 = arith.negf %234 : vector<8x128xf32>
    %236 = math.exp %235 : vector<8x128xf32>
    %cst_41 = arith.constant 1.000000e+00 : f32
    %237 = vector.broadcast %cst_41 : f32 to vector<8x128xf32>
    %238 = arith.addf %237, %236 : vector<8x128xf32>
    %239 = arith.divf %237, %238 : vector<8x128xf32>
    %240 = vector.extract_strided_slice %229 {offsets = [0, 128], sizes = [8, 128], strides = [1, 1]} : vector<8x384xf32> to vector<8x128xf32>
    %241 = vector.extract_strided_slice %231 {offsets = [0, 128], sizes = [8, 128], strides = [1, 1]} : vector<8x384xf32> to vector<8x128xf32>
    %242 = arith.addf %240, %241 : vector<8x128xf32>
    %243 = arith.negf %242 : vector<8x128xf32>
    %244 = math.exp %243 : vector<8x128xf32>
    %cst_42 = arith.constant 1.000000e+00 : f32
    %245 = vector.broadcast %cst_42 : f32 to vector<8x128xf32>
    %246 = arith.addf %245, %244 : vector<8x128xf32>
    %247 = arith.divf %245, %246 : vector<8x128xf32>
    %248 = vector.extract_strided_slice %229 {offsets = [0, 256], sizes = [8, 128], strides = [1, 1]} : vector<8x384xf32> to vector<8x128xf32>
    %249 = vector.extract_strided_slice %231 {offsets = [0, 256], sizes = [8, 128], strides = [1, 1]} : vector<8x384xf32> to vector<8x128xf32>
    %250 = vector.broadcast %10 : vector<1x128xf32> to vector<8x128xf32>
    %251 = arith.addf %249, %250 : vector<8x128xf32>
    %252 = arith.mulf %239, %251 : vector<8x128xf32>
    %253 = arith.addf %248, %252 : vector<8x128xf32>
    %254 = math.tanh %253 : vector<8x128xf32>
    %cst_43 = arith.constant 1.000000e+00 : f32
    %255 = vector.broadcast %cst_43 : f32 to vector<8x128xf32>
    %256 = arith.subf %255, %247 : vector<8x128xf32>
    %257 = arith.mulf %256, %254 : vector<8x128xf32>
    %258 = arith.mulf %247, %228 : vector<8x128xf32>
    %259 = arith.addf %257, %258 : vector<8x128xf32>
    %c0_44 = arith.constant 0 : index
    %c0_45 = arith.constant 0 : index
    %260 = vector.load %arg9[%c0_44, %c0_45] : memref<8x128xf32, #tpu.memory_space<vmem>>, vector<8x128xf32>
    tpu.vector_store %arg9[%c0_44, %c0_45], %259 {strides = array<i32>} : memref<8x128xf32, #tpu.memory_space<vmem>>, vector<8x128xf32>,
    %c0_i32_46 = arith.constant 0 : i32
    %261 = arith.cmpi eq, %arg0, %c0_i32_46 : i32
    %262 = arith.extui %261 : i1 to i32
    %c0_i32_47 = arith.constant 0 : i32
    %263 = arith.cmpi ne, %262, %c0_i32_47 : i32
    scf.if %263 {
      %264 = arith.truncf %259 : vector<8x128xf32> to vector<8x128xbf16>
      %c0_48 = arith.constant 0 : index
      %c0_49 = arith.constant 0 : index
      %265 = vector.load %arg6[%c0_48, %c0_49] : memref<128x4xbf16, #tpu.memory_space<vmem>>, vector<128x4xbf16>
      %cst_50 = arith.constant dense<0.000000e+00> : vector<8x4xf32>
      %266 = tpu.matmul %264, %265, %cst_50 {dimension_numbers = #tpu.dot_dimension_numbers<[1], [0], [0], [1], [0, 0, 1, 1], [], []>} : vector<8x128xbf16>, vector<128x4xbf16>, vector<8x4xf32> -> vector<8x4xf32>
      %c0_51 = arith.constant 0 : index
      %c0_52 = arith.constant 0 : index
      %267 = vector.load %arg7[%c0_51, %c0_52] : memref<1x4xf32, #tpu.memory_space<vmem>>, vector<1x4xf32>
      %268 = vector.broadcast %267 : vector<1x4xf32> to vector<8x4xf32>
      %269 = arith.addf %266, %268 : vector<8x4xf32>
      %c0_53 = arith.constant 0 : index
      %c0_54 = arith.constant 0 : index
      %270 = vector.load %arg8[%c0_53, %c0_54] : memref<8x4xf32, #tpu.memory_space<vmem>>, vector<8x4xf32>
      tpu.vector_store %arg8[%c0_53, %c0_54], %269 {strides = array<i32>} : memref<8x4xf32, #tpu.memory_space<vmem>>, vector<8x4xf32>,
    } else {
    }
    return
  }
  func.func @transform_0(%arg0: i32) -> (i32, i32) {
    %c0_i32 = arith.constant 0 : i32
    %c0_i32_0 = arith.constant 0 : i32
    return %arg0, %c0_i32 : i32, i32
  }
  func.func @transform_1(%arg0: i32) -> (i32, i32) {
    %c0_i32 = arith.constant 0 : i32
    %c0_i32_0 = arith.constant 0 : i32
    %c0_i32_1 = arith.constant 0 : i32
    return %c0_i32, %c0_i32_0 : i32, i32
  }
  func.func @transform_2(%arg0: i32) -> (i32, i32) {
    %c0_i32 = arith.constant 0 : i32
    %c0_i32_0 = arith.constant 0 : i32
    %c0_i32_1 = arith.constant 0 : i32
    return %c0_i32, %c0_i32_0 : i32, i32
  }
  func.func @transform_3(%arg0: i32) -> (i32, i32) {
    %c0_i32 = arith.constant 0 : i32
    %c0_i32_0 = arith.constant 0 : i32
    %c0_i32_1 = arith.constant 0 : i32
    return %c0_i32, %c0_i32_0 : i32, i32
  }
  func.func @transform_4(%arg0: i32) -> (i32, i32) {
    %c0_i32 = arith.constant 0 : i32
    %c0_i32_0 = arith.constant 0 : i32
    %c0_i32_1 = arith.constant 0 : i32
    return %c0_i32, %c0_i32_0 : i32, i32
  }
  func.func @transform_5(%arg0: i32) -> (i32, i32) {
    %c0_i32 = arith.constant 0 : i32
    %c0_i32_0 = arith.constant 0 : i32
    %c0_i32_1 = arith.constant 0 : i32
    return %c0_i32, %c0_i32_0 : i32, i32
  }
  func.func @transform_6(%arg0: i32) -> (i32, i32) {
    %c0_i32 = arith.constant 0 : i32
    %c0_i32_0 = arith.constant 0 : i32
    %c0_i32_1 = arith.constant 0 : i32
    return %c0_i32, %c0_i32_0 : i32, i32
  }
  func.func @transform_7(%arg0: i32) -> (i32, i32) {
    %c0_i32 = arith.constant 0 : i32
    %c0_i32_0 = arith.constant 0 : i32
    %c0_i32_1 = arith.constant 0 : i32
    return %c0_i32, %c0_i32_0 : i32, i32
  }
}

</mosaic_0001>

<llo_original>
// kernel: tpu_custom_call.1
$region0: #{tpu_custom_call.1}
  #allocation0 [shape = 'u32[]', space=smem, size = 0x4, offset = 0x4, fixed_abs, tag = 'smem constant byte address 0x4 - core index']
  #allocation1 [shape = 'u32[144,128]{1,0:T(1,128)}', space=vmem, size = 0x12000, scoped, tag = 'internal scratch']
  #allocation2 [shape = 'f32[8,128]{1,0:T(8,128)}', space=vmem, size = 0x1000, scoped, tag = 'scratch operand']
  %s0 = inlined_call_operand.vmem [shape: bf16[64,8], index: 0, kind: input, shape index: {}]
  %s1 = inlined_call_operand.vmem [shape: bf16[8,384], index: 1, kind: input, shape index: {}]
  %s2 = inlined_call_operand.vmem [shape: f32[1,384], index: 2, kind: input, shape index: {}]
  %s3 = inlined_call_operand.hbm [shape: bf16[128,384], index: 3, kind: input, shape index: {}]
  %s4 = inlined_call_operand.vmem [shape: f32[1,128], index: 4, kind: input, shape index: {}]
  %s5 = inlined_call_operand.vmem [shape: bf16[128,4], index: 5, kind: input, shape index: {}]
  %s6 = inlined_call_operand.vmem [shape: f32[1,4], index: 6, kind: input, shape index: {}]
  %s7 = inlined_call_operand.vmem [shape: f32[8,4], index: 7, kind: output, shape index: {}]
  %s8 = sld [smem:[#allocation0]]
  $region50: #{tpu_custom_call.1} parent=0
    _
  %s10 = ssub.s32 1, %s8
  %s11 = scalar_select 0, %s10, %s8
  $region1: #{tpu_custom_call.1} parent=0
    #allocation3 [shape = 'u8[98304]{0}', space=vmem, size = 0x18000, scoped, tag = 'input window, operand 3, single buffered']
    #allocation4 [shape = 's32[1]{0}', space=sflag, size = 0x4, scoped, tag = 'scoped memory for tpu_custom_call.1']
    %12 = vsyncpa [#allocation4], 0
    // Predicated region
    $region2: #{tpu_custom_call.1} parent=1 // pred_check
      _
    $region3: #{tpu_custom_call.1} parent=1 // pred_check_branch
      %14 = sbr.rel (0) target = $region5
    $region4: #{tpu_custom_call.1} parent=1 // pred_region
      _
    $region5: #{tpu_custom_call.1} parent=1 // pred_fallthru
      _
    // Predicated region
    $region6: #{tpu_custom_call.1} parent=1 // pred_check
      _
    $region7: #{tpu_custom_call.1} parent=1 // pred_check_branch
      %16 = sbr.rel (0) target = $region9
    $region8: #{tpu_custom_call.1} parent=1 // pred_region
      _
    $region9: #{tpu_custom_call.1} parent=1 // pred_fallthru
      _
    // Predicated region
    $region10: #{tpu_custom_call.1} parent=1 // pred_check
      _
    $region11: #{tpu_custom_call.1} parent=1 // pred_check_branch
      %18 = sbr.rel (0) target = $region13
    $region12: #{tpu_custom_call.1} parent=1 // pred_region
      _
    $region13: #{tpu_custom_call.1} parent=1 // pred_fallthru
      _
    // Predicated region
    $region14: #{tpu_custom_call.1} parent=1 // pred_check
      _
    $region15: #{tpu_custom_call.1} parent=1 // pred_check_branch
      %20 = sbr.rel (0) target = $region17
    $region16: #{tpu_custom_call.1} parent=1 // pred_region
      %s22 = ssub.s32 3072, 3072
      %23 = vsyncadd [#allocation4], %s22
      %s24 = sshll.u32 [#allocation3], 4
      %s25 = int_to_ptr.vmem [resolvable:$true] %s24
      %30 = dma.hbm_to_vmem [thread:$0]  %s3, 3072, %s25, [#allocation4], 192, 192, 12
    $region17: #{tpu_custom_call.1} parent=1 // pred_fallthru
      _
    // Predicated region
    $region18: #{tpu_custom_call.1} parent=1 // pred_check
      _
    $region19: #{tpu_custom_call.1} parent=1 // pred_check_branch
      %32 = sbr.rel (0) target = $region21
    $region20: #{tpu_custom_call.1} parent=1 // pred_region
      _
    $region21: #{tpu_custom_call.1} parent=1 // pred_fallthru
      _
    // Predicated region
    $region22: #{tpu_custom_call.1} parent=1 // pred_check
      _
    $region23: #{tpu_custom_call.1} parent=1 // pred_check_branch
      %34 = sbr.rel (0) target = $region25
    $region24: #{tpu_custom_call.1} parent=1 // pred_region
      _
    $region25: #{tpu_custom_call.1} parent=1 // pred_fallthru
      _
    // Predicated region
    $region26: #{tpu_custom_call.1} parent=1 // pred_check
      _
    $region27: #{tpu_custom_call.1} parent=1 // pred_check_branch
      %36 = sbr.rel (0) target = $region29
    $region28: #{tpu_custom_call.1} parent=1 // pred_region
      _
    $region29: #{tpu_custom_call.1} parent=1 // pred_fallthru
      _
    // Predicated region
    $region30: #{tpu_custom_call.1} parent=1 // pred_check
      _
    $region31: #{tpu_custom_call.1} parent=1 // pred_check_branch
      %38 = sbr.rel (0) target = $region33
    $region32: #{tpu_custom_call.1} parent=1 // pred_region
      %39 = dma.done [#allocation4], 3072
    $region33: #{tpu_custom_call.1} parent=1 // pred_fallthru
      _
    %p41 = scmp.eq.s32.totalorder 0, 0
    // Predicated region
    $region34: #{tpu_custom_call.1} parent=1 // pred_check
      %p42 = pneg %p41
    $region35: #{tpu_custom_call.1} parent=1 // pred_check_branch
      %44 = sbr.rel (%p42) target = $region37
    $region36: #{tpu_custom_call.1} parent=1 // pred_region
      %45 = vst [vmem:[#allocation2] sm:$0xff] 0.0
    $region37: #{tpu_custom_call.1} parent=1 // pred_fallthru
      _
    %v46 = vld [vmem:[%s0] sm:$0xf]
    %v47 = vld [vmem:[%s0 + $0x4] sm:$0xf]
    %v48 = vld [vmem:[%s0 + $0x8] sm:$0xf]
    %v49 = vld [vmem:[%s0 + $0xc] sm:$0xf]
    %v50 = vld [vmem:[%s0 + $0x10] sm:$0xf]
    %v51 = vld [vmem:[%s0 + $0x14] sm:$0xf]
    %v52 = vld [vmem:[%s0 + $0x18] sm:$0xf]
    %v53 = vld [vmem:[%s0 + $0x1c] sm:$0xf]
    %v54 = vld [vmem:[%s1] sm:$0xff]
    %v55 = vld [vmem:[%s1 + $0x8] sm:$0xf]
    %v56 = vld [vmem:[%s2] sm:$0x7]
    %v58 = vlaneseq
    %v59 = vshrl.u32 %v58, 7
    %v60 = vsub.s32 0, %v59
    %v61 = vrot.slane %v56, %v60
    %v62 = vlaneseq
    %v63 = vshrl.u32 %v62, 7
    %v64 = vsub.s32 1, %v63
    %v65 = vrot.slane %v56, %v64
    %v66 = vlaneseq
    %v67 = vshrl.u32 %v66, 7
    %v68 = vsub.s32 2, %v67
    %v69 = vrot.slane %v56, %v68
    %v81 = vunpack.c.l.b16 %v46
    %v82 = vunpack.c.l.b16 %v47
    %v83 = vunpack.c.l.b16 %v48
    %v84 = vunpack.c.l.b16 %v49
    %v85 = vunpack.c.l.b16 %v50
    %v86 = vunpack.c.l.b16 %v51
    %v87 = vunpack.c.l.b16 %v52
    %v88 = vunpack.c.l.b16 %v53
    %v89 = vpack.c.b16 %v82, %v81
    %v90 = vpack.c.b16 %v84, %v83
    %v91 = vpack.c.b16 %v86, %v85
    %v92 = vpack.c.b16 %v88, %v87
    %v95 = vunpack.c.l.b16 %v54
    %v96 = vunpack.c.h.b16 %v54
    %v97 = vunpack.c.l.b16 %v55
    %v98 = vpack.c.b16 %v95, %v95
    %v99 = vpack.c.b16 %v96, %v96
    %v100 = vpack.c.b16 %v97, %v97
    %vm101 = vcmask 64512
    %v103 = vsel %vm101, %v89, 0
    %v106 = vsel %vm101, %v90, 0
    %v109 = vsel %vm101, %v91, 0
    %v112 = vsel %vm101, %v92, 0
    %vm114 = vcmask 1043456
    %v116 = vsel %vm114, %v98, 0
    %v119 = vsel %vm114, %v99, 0
    %v122 = vsel %vm114, %v100, 0
    %124 = vmatprep.subr.bf16.mxu0 %v119
    %125 = vmatpush1.bf16.msra.mxu0 %v116
    %126 = vmatprep.subr.bf16.mxu0 0
    %127 = vmatpush1.bf16.msra.mxu0 0
    %128 = vmatprep.subr.bf16.mxu0 0
    %129 = vmatpush1.bf16.msra.mxu0 0
    %130 = vmatprep.subr.bf16.mxu0 0
    %131 = vmatpush1.bf16.msra.mxu0 0
    %132 = vmatprep.subr.bf16.mxu0 0
    %133 = vmatpush1.bf16.msra.mxu0 0
    %134 = vmatprep.subr.bf16.mxu0 0
    %135 = vmatpush1.bf16.msra.mxu0 0
    %136 = vmatprep.subr.bf16.mxu0 0
    %137 = vmatpush1.bf16.msra.mxu0 0
    %138 = vmatprep.subr.bf16.mxu0 0
    %139 = vmatpush1.bf16.msra.mxu0 0
    %140 = vmatprep.subr.bf16.mxu0 0
    %141 = vmatpush1.bf16.msra.mxu0 0
    %142 = vmatprep.subr.bf16.mxu0 0
    %143 = vmatpush1.bf16.msra.mxu0 0
    %144 = vmatprep.subr.bf16.mxu0 0
    %145 = vmatpush1.bf16.msra.mxu0 0
    %146 = vmatprep.subr.bf16.mxu0 0
    %147 = vmatpush1.bf16.msra.mxu0 0
    %148 = vmatprep.subr.bf16.mxu0 0
    %149 = vmatpush1.bf16.msra.mxu0 0
    %150 = vmatprep.subr.bf16.mxu0 0
    %151 = vmatpush1.bf16.msra.mxu0 0
    %152 = vmatprep.subr.bf16.mxu0 0
    %153 = vmatpush1.bf16.msra.mxu0 0
    %154 = vmatprep.subr.bf16.mxu0 0
    %155 = vmatpush1.bf16.msra.mxu0 0
    %156 = vmatprep.mubr.bf16.mxu0 0
    %157 = vmatmul.mubr.bf16.gmra.mrb[0].mxu0 %v103
    %v158 = vpop.f32.mrb[0].mxu0
    %v159 = vadd.f32 %v61, %v158
    %v160 = vpop.f32.mrb[0].mxu0
    %v161 = vadd.f32 %v65, %v160
    %v162 = vpop.f32.mrb[0].mxu0
    %v163 = vadd.f32 %v61, %v162
    %v164 = vpop.f32.mrb[0].mxu0
    %v165 = vadd.f32 %v65, %v164
    %166 = vmatprep.mubr.bf16.mxu0 0
    %167 = vmatmul.mubr.bf16.gmra.mrb[0].mxu0 %v106
    %v168 = vpop.f32.mrb[0].mxu0
    %v169 = vadd.f32 %v61, %v168
    %v170 = vpop.f32.mrb[0].mxu0
    %v171 = vadd.f32 %v65, %v170
    %v172 = vpop.f32.mrb[0].mxu0
    %v173 = vadd.f32 %v61, %v172
    %v174 = vpop.f32.mrb[0].mxu0
    %v175 = vadd.f32 %v65, %v174
    %176 = vmatprep.mubr.bf16.mxu0 0
    %177 = vmatmul.mubr.bf16.gmra.mrb[0].mxu0 %v109
    %v178 = vpop.f32.mrb[0].mxu0
    %v179 = vadd.f32 %v61, %v178
    %v180 = vpop.f32.mrb[0].mxu0
    %v181 = vadd.f32 %v65, %v180
    %v182 = vpop.f32.mrb[0].mxu0
    %v183 = vadd.f32 %v61, %v182
    %v184 = vpop.f32.mrb[0].mxu0
    %v185 = vadd.f32 %v65, %v184
    %186 = vmatprep.mubr.bf16.mxu0 0
    %187 = vmatmul.mubr.bf16.gmra.mrb[0].mxu0 %v112
    %v188 = vpop.f32.mrb[0].mxu0
    %v189 = vadd.f32 %v61, %v188
    %v190 = vpop.f32.mrb[0].mxu0
    %v191 = vadd.f32 %v65, %v190
    %v192 = vpop.f32.mrb[0].mxu0
    %v193 = vadd.f32 %v61, %v192
    %v194 = vpop.f32.mrb[0].mxu0
    %v195 = vadd.f32 %v65, %v194
    %196 = vdwg.mxu0
    %197 = vmatprep.subr.bf16.mxu0 0
    %198 = vmatpush1.bf16.msra.mxu0 %v122
    %199 = vmatprep.subr.bf16.mxu0 0
    %200 = vmatpush1.bf16.msra.mxu0 0
    %201 = vmatprep.subr.bf16.mxu0 0
    %202 = vmatpush1.bf16.msra.mxu0 0
    %203 = vmatprep.subr.bf16.mxu0 0
    %204 = vmatpush1.bf16.msra.mxu0 0
    %205 = vmatprep.subr.bf16.mxu0 0
    %206 = vmatpush1.bf16.msra.mxu0 0
    %207 = vmatprep.subr.bf16.mxu0 0
    %208 = vmatpush1.bf16.msra.mxu0 0
    %209 = vmatprep.subr.bf16.mxu0 0
    %210 = vmatpush1.bf16.msra.mxu0 0
    %211 = vmatprep.subr.bf16.mxu0 0
    %212 = vmatpush1.bf16.msra.mxu0 0
    %213 = vmatprep.subr.bf16.mxu0 0
    %214 = vmatpush1.bf16.msra.mxu0 0
    %215 = vmatprep.subr.bf16.mxu0 0
    %216 = vmatpush1.bf16.msra.mxu0 0
    %217 = vmatprep.subr.bf16.mxu0 0
    %218 = vmatpush1.bf16.msra.mxu0 0
    %219 = vmatprep.subr.bf16.mxu0 0
    %220 = vmatpush1.bf16.msra.mxu0 0
    %221 = vmatprep.subr.bf16.mxu0 0
    %222 = vmatpush1.bf16.msra.mxu0 0
    %223 = vmatprep.subr.bf16.mxu0 0
    %224 = vmatpush1.bf16.msra.mxu0 0
    %225 = vmatprep.subr.bf16.mxu0 0
    %226 = vmatpush1.bf16.msra.mxu0 0
    %227 = vmatprep.subr.bf16.mxu0 0
    %228 = vmatpush1.bf16.msra.mxu0 0
    %229 = vmatprep.mubr.bf16.mxu0 0
    %230 = vmatmul.mubr.bf16.gmra.mrb[0].mxu0 %v103
    %v231 = vpop.f32.mrb[0].mxu0
    %v232 = vadd.f32 %v69, %v231
    %v233 = vpop.f32.mrb[0].mxu0
    %v234 = vpop.f32.mrb[0].mxu0
    %v235 = vadd.f32 %v69, %v234
    %v236 = vpop.f32.mrb[0].mxu0
    %237 = vmatprep.mubr.bf16.mxu0 0
    %238 = vmatmul.mubr.bf16.gmra.mrb[0].mxu0 %v106
    %v239 = vpop.f32.mrb[0].mxu0
    %v240 = vadd.f32 %v69, %v239
    %v241 = vpop.f32.mrb[0].mxu0
    %v242 = vpop.f32.mrb[0].mxu0
    %v243 = vadd.f32 %v69, %v242
    %v244 = vpop.f32.mrb[0].mxu0
    %245 = vmatprep.mubr.bf16.mxu0 0
    %246 = vmatmul.mubr.bf16.gmra.mrb[0].mxu0 %v109
    %v247 = vpop.f32.mrb[0].mxu0
    %v248 = vadd.f32 %v69, %v247
    %v249 = vpop.f32.mrb[0].mxu0
    %v250 = vpop.f32.mrb[0].mxu0
    %v251 = vadd.f32 %v69, %v250
    %v252 = vpop.f32.mrb[0].mxu0
    %253 = vmatprep.mubr.bf16.mxu0 0
    %254 = vmatmul.mubr.bf16.gmra.mrb[0].mxu0 %v112
    %v255 = vpop.f32.mrb[0].mxu0
    %v256 = vadd.f32 %v69, %v255
    %v257 = vpop.f32.mrb[0].mxu0
    %v258 = vpop.f32.mrb[0].mxu0
    %v259 = vadd.f32 %v69, %v258
    %v260 = vpop.f32.mrb[0].mxu0
    %261 = vdwg.mxu0
    %v262 = vld [vmem:[#allocation3] sm:$0xff]
    %v263 = vld [vmem:[#allocation3 + $0x8] sm:$0xf]
    %v264 = vld [vmem:[#allocation3 + $0xc] sm:$0xff]
    %v265 = vld [vmem:[#allocation3 + $0x14] sm:$0xf]
    %v266 = vld [vmem:[#allocation3 + $0x18] sm:$0xff]
    %v267 = vld [vmem:[#allocation3 + $0x20] sm:$0xf]
    %v268 = vld [vmem:[#allocation3 + $0x24] sm:$0xff]
    %v269 = vld [vmem:[#allocation3 + $0x2c] sm:$0xf]
    %v270 = vld [vmem:[#allocation3 + $0x30] sm:$0xff]
    %v271 = vld [vmem:[#allocation3 + $0x38] sm:$0xf]
    %v272 = vld [vmem:[#allocation3 + $0x3c] sm:$0xff]
    %v273 = vld [vmem:[#allocation3 + $0x44] sm:$0xf]
    %v274 = vld [vmem:[#allocation3 + $0x48] sm:$0xff]
    %v275 = vld [vmem:[#allocation3 + $0x50] sm:$0xf]
    %v276 = vld [vmem:[#allocation3 + $0x54] sm:$0xff]
    %v277 = vld [vmem:[#allocation3 + $0x5c] sm:$0xf]
    %v278 = vld [vmem:[#allocation3 + $0x60] sm:$0xff]
    %v279 = vld [vmem:[#allocation3 + $0x68] sm:$0xf]
    %v280 = vld [vmem:[#allocation3 + $0x6c] sm:$0xff]
    %v281 = vld [vmem:[#allocation3 + $0x74] sm:$0xf]
    %v282 = vld [vmem:[#allocation3 + $0x78] sm:$0xff]
    %v283 = vld [vmem:[#allocation3 + $0x80] sm:$0xf]
    %v284 = vld [vmem:[#allocation3 + $0x84] sm:$0xff]
    %v285 = vld [vmem:[#allocation3 + $0x8c] sm:$0xf]
    %v286 = vld [vmem:[#allocation3 + $0x90] sm:$0xff]
    %v287 = vld [vmem:[#allocation3 + $0x98] sm:$0xf]
    %v288 = vld [vmem:[#allocation3 + $0x9c] sm:$0xff]
    %v289 = vld [vmem:[#allocation3 + $0xa4] sm:$0xf]
    %v290 = vld [vmem:[#allocation3 + $0xa8] sm:$0xff]
    %v291 = vld [vmem:[#allocation3 + $0xb0] sm:$0xf]
    %v292 = vld [vmem:[#allocation3 + $0xb4] sm:$0xff]
    %v293 = vld [vmem:[#allocation3 + $0xbc] sm:$0xf]
    %v294 = vld [vmem:[%s4] sm:$0x1]
    %v295 = vld [vmem:[#allocation2] sm:$0xff]
    %v296 = vpack.c.bf16 %v295, %v295
    %v329 = vunpack.c.l.b16 %v262
    %v330 = vunpack.c.h.b16 %v262
    %v331 = vunpack.c.l.b16 %v263
    %v332 = vunpack.c.l.b16 %v264
    %v333 = vunpack.c.h.b16 %v264
    %v334 = vunpack.c.l.b16 %v265
    %v335 = vunpack.c.l.b16 %v266
    %v336 = vunpack.c.h.b16 %v266
    %v337 = vunpack.c.l.b16 %v267
    %v338 = vunpack.c.l.b16 %v268
    %v339 = vunpack.c.h.b16 %v268
    %v340 = vunpack.c.l.b16 %v269
    %v341 = vunpack.c.l.b16 %v270
    %v342 = vunpack.c.h.b16 %v270
    %v343 = vunpack.c.l.b16 %v271
    %v344 = vunpack.c.l.b16 %v272
    %v345 = vunpack.c.h.b16 %v272
    %v346 = vunpack.c.l.b16 %v273
    %v347 = vunpack.c.l.b16 %v274
    %v348 = vunpack.c.h.b16 %v274
    %v349 = vunpack.c.l.b16 %v275
    %v350 = vunpack.c.l.b16 %v276
    %v351 = vunpack.c.h.b16 %v276
    %v352 = vunpack.c.l.b16 %v277
    %v353 = vunpack.c.l.b16 %v278
    %v354 = vunpack.c.h.b16 %v278
    %v355 = vunpack.c.l.b16 %v279
    %v356 = vunpack.c.l.b16 %v280
    %v357 = vunpack.c.h.b16 %v280
    %v358 = vunpack.c.l.b16 %v281
    %v359 = vunpack.c.l.b16 %v282
    %v360 = vunpack.c.h.b16 %v282
    %v361 = vunpack.c.l.b16 %v283
    %v362 = vunpack.c.l.b16 %v284
    %v363 = vunpack.c.h.b16 %v284
    %v364 = vunpack.c.l.b16 %v285
    %v365 = vunpack.c.l.b16 %v286
    %v366 = vunpack.c.h.b16 %v286
    %v367 = vunpack.c.l.b16 %v287
    %v368 = vunpack.c.l.b16 %v288
    %v369 = vunpack.c.h.b16 %v288
    %v370 = vunpack.c.l.b16 %v289
    %v371 = vunpack.c.l.b16 %v290
    %v372 = vunpack.c.h.b16 %v290
    %v373 = vunpack.c.l.b16 %v291
    %v374 = vunpack.c.l.b16 %v292
    %v375 = vunpack.c.h.b16 %v292
    %v376 = vunpack.c.l.b16 %v293
    %v377 = vpack.c.b16 %v332, %v329
    %v378 = vpack.c.b16 %v333, %v330
    %v379 = vpack.c.b16 %v334, %v331
    %v380 = vpack.c.b16 %v338, %v335
    %v381 = vpack.c.b16 %v339, %v336
    %v382 = vpack.c.b16 %v340, %v337
    %v383 = vpack.c.b16 %v344, %v341
    %v384 = vpack.c.b16 %v345, %v342
    %v385 = vpack.c.b16 %v346, %v343
    %v386 = vpack.c.b16 %v350, %v347
    %v387 = vpack.c.b16 %v351, %v348
    %v388 = vpack.c.b16 %v352, %v349
    %v389 = vpack.c.b16 %v356, %v353
    %v390 = vpack.c.b16 %v357, %v354
    %v391 = vpack.c.b16 %v358, %v355
    %v392 = vpack.c.b16 %v362, %v359
    %v393 = vpack.c.b16 %v363, %v360
    %v394 = vpack.c.b16 %v364, %v361
    %v395 = vpack.c.b16 %v368, %v365
    %v396 = vpack.c.b16 %v369, %v366
    %v397 = vpack.c.b16 %v370, %v367
    %v398 = vpack.c.b16 %v374, %v371
    %v399 = vpack.c.b16 %v375, %v372
    %v400 = vpack.c.b16 %v376, %v373
    %425 = vmatprep.subr.bf16.mxu0 %v378
    %426 = vmatpush1.bf16.msra.mxu0 %v377
    %427 = vmatprep.subr.bf16.mxu0 %v381
    %428 = vmatpush1.bf16.msra.mxu0 %v380
    %429 = vmatprep.subr.bf16.mxu0 %v384
    %430 = vmatpush1.bf16.msra.mxu0 %v383
    %431 = vmatprep.subr.bf16.mxu0 %v387
    %432 = vmatpush1.bf16.msra.mxu0 %v386
    %433 = vmatprep.subr.bf16.mxu0 %v390
    %434 = vmatpush1.bf16.msra.mxu0 %v389
    %435 = vmatprep.subr.bf16.mxu0 %v393
    %436 = vmatpush1.bf16.msra.mxu0 %v392
    %437 = vmatprep.subr.bf16.mxu0 %v396
    %438 = vmatpush1.bf16.msra.mxu0 %v395
    %439 = vmatprep.subr.bf16.mxu0 %v399
    %440 = vmatpush1.bf16.msra.mxu0 %v398
    %441 = vmatprep.subr.bf16.mxu0 0
    %442 = vmatpush1.bf16.msra.mxu0 0
    %443 = vmatprep.subr.bf16.mxu0 0
    %444 = vmatpush1.bf16.msra.mxu0 0
    %445 = vmatprep.subr.bf16.mxu0 0
    %446 = vmatpush1.bf16.msra.mxu0 0
    %447 = vmatprep.subr.bf16.mxu0 0
    %448 = vmatpush1.bf16.msra.mxu0 0
    %449 = vmatprep.subr.bf16.mxu0 0
    %450 = vmatpush1.bf16.msra.mxu0 0
    %451 = vmatprep.subr.bf16.mxu0 0
    %452 = vmatpush1.bf16.msra.mxu0 0
    %453 = vmatprep.subr.bf16.mxu0 0
    %454 = vmatpush1.bf16.msra.mxu0 0
    %455 = vmatprep.subr.bf16.mxu0 0
    %456 = vmatpush1.bf16.msra.mxu0 0
    %457 = vmatprep.mubr.bf16.mxu0 0
    %458 = vmatmul.mubr.bf16.gmra.mrb[0].mxu0 %v296
    %v459 = vpop.f32.mrb[0].mxu0
    %v460 = vadd.f32 0.0, %v459
    %v461 = vpop.f32.mrb[0].mxu0
    %v462 = vadd.f32 0.0, %v461
    %v463 = vpop.f32.mrb[0].mxu0
    %v464 = vpop.f32.mrb[0].mxu0
    %465 = vdwg.mxu0
    %466 = vmatprep.subr.bf16.mxu0 0
    %467 = vmatpush1.bf16.msra.mxu0 %v379
    %468 = vmatprep.subr.bf16.mxu0 0
    %469 = vmatpush1.bf16.msra.mxu0 %v382
    %470 = vmatprep.subr.bf16.mxu0 0
    %471 = vmatpush1.bf16.msra.mxu0 %v385
    %472 = vmatprep.subr.bf16.mxu0 0
    %473 = vmatpush1.bf16.msra.mxu0 %v388
    %474 = vmatprep.subr.bf16.mxu0 0
    %475 = vmatpush1.bf16.msra.mxu0 %v391
    %476 = vmatprep.subr.bf16.mxu0 0
    %477 = vmatpush1.bf16.msra.mxu0 %v394
    %478 = vmatprep.subr.bf16.mxu0 0
    %479 = vmatpush1.bf16.msra.mxu0 %v397
    %480 = vmatprep.subr.bf16.mxu0 0
    %481 = vmatpush1.bf16.msra.mxu0 %v400
    %482 = vmatprep.subr.bf16.mxu0 0
    %483 = vmatpush1.bf16.msra.mxu0 0
    %484 = vmatprep.subr.bf16.mxu0 0
    %485 = vmatpush1.bf16.msra.mxu0 0
    %486 = vmatprep.subr.bf16.mxu0 0
    %487 = vmatpush1.bf16.msra.mxu0 0
    %488 = vmatprep.subr.bf16.mxu0 0
    %489 = vmatpush1.bf16.msra.mxu0 0
    %490 = vmatprep.subr.bf16.mxu0 0
    %491 = vmatpush1.bf16.msra.mxu0 0
    %492 = vmatprep.subr.bf16.mxu0 0
    %493 = vmatpush1.bf16.msra.mxu0 0
    %494 = vmatprep.subr.bf16.mxu0 0
    %495 = vmatpush1.bf16.msra.mxu0 0
    %496 = vmatprep.subr.bf16.mxu0 0
    %497 = vmatpush1.bf16.msra.mxu0 0
    %498 = vmatprep.mubr.bf16.mxu0 0
    %499 = vmatmul.mubr.bf16.gmra.mrb[0].mxu0 %v296
    %v500 = vpop.f32.mrb[0].mxu0
    %v501 = vadd.f32 0.0, %v500
    %v502 = vpop.f32.mrb[0].mxu0
    %v503 = vpop.f32.mrb[0].mxu0
    %v504 = vpop.f32.mrb[0].mxu0
    %505 = vdwg.mxu0
    %v506 = vadd.f32 %v159, %v460
    %v507 = vxor.u32 %v506, 2147483648
    %v508 = vmul.f32 %v507, 1.442695
    %v509 = vpow.pop %v508
    %v510 = vadd.f32 %v509, 1.0
    %v511 = vrcp.pop %v510
    %v512 = vmul.f32 1.0, %v511
    %v513 = vadd.f32 %v161, %v462
    %v514 = vxor.u32 %v513, 2147483648
    %v515 = vmul.f32 %v514, 1.442695
    %v516 = vpow.pop %v515
    %v517 = vadd.f32 %v516, 1.0
    %v518 = vrcp.pop %v517
    %v519 = vmul.f32 1.0, %v518
    %v521 = vlaneseq
    %v522 = vshrl.u32 %v521, 7
    %v523 = vsub.s32 0, %v522
    %v524 = vrot.slane %v294, %v523
    %v526 = vadd.f32 %v501, %v524
    %v527 = vmul.f32 %v512, %v526
    %v528 = vadd.f32 %v232, %v527
    %v529 = vtanh.pop %v528
    %v530 = vsub.f32 1.0, %v519
    %v531 = vmul.f32 %v530, %v529
    %v532 = vmul.f32 %v519, %v295
    %v533 = vadd.f32 %v531, %v532
    %v534 = vpack.c.bf16 %v533, %v533
    %535 = vmatprep.subr.bf16.mxu0 %v378
    %536 = vmatpush1.bf16.msra.mxu0 %v377
    %537 = vmatprep.subr.bf16.mxu0 %v381
    %538 = vmatpush1.bf16.msra.mxu0 %v380
    %539 = vmatprep.subr.bf16.mxu0 %v384
    %540 = vmatpush1.bf16.msra.mxu0 %v383
    %541 = vmatprep.subr.bf16.mxu0 %v387
    %542 = vmatpush1.bf16.msra.mxu0 %v386
    %543 = vmatprep.subr.bf16.mxu0 %v390
    %544 = vmatpush1.bf16.msra.mxu0 %v389
    %545 = vmatprep.subr.bf16.mxu0 %v393
    %546 = vmatpush1.bf16.msra.mxu0 %v392
    %547 = vmatprep.subr.bf16.mxu0 %v396
    %548 = vmatpush1.bf16.msra.mxu0 %v395
    %549 = vmatprep.subr.bf16.mxu0 %v399
    %550 = vmatpush1.bf16.msra.mxu0 %v398
    %551 = vmatprep.subr.bf16.mxu0 0
    %552 = vmatpush1.bf16.msra.mxu0 0
    %553 = vmatprep.subr.bf16.mxu0 0
    %554 = vmatpush1.bf16.msra.mxu0 0
    %555 = vmatprep.subr.bf16.mxu0 0
    %556 = vmatpush1.bf16.msra.mxu0 0
    %557 = vmatprep.subr.bf16.mxu0 0
    %558 = vmatpush1.bf16.msra.mxu0 0
    %559 = vmatprep.subr.bf16.mxu0 0
    %560 = vmatpush1.bf16.msra.mxu0 0
    %561 = vmatprep.subr.bf16.mxu0 0
    %562 = vmatpush1.bf16.msra.mxu0 0
    %563 = vmatprep.subr.bf16.mxu0 0
    %564 = vmatpush1.bf16.msra.mxu0 0
    %565 = vmatprep.subr.bf16.mxu0 0
    %566 = vmatpush1.bf16.msra.mxu0 0
    %567 = vmatprep.mubr.bf16.mxu0 0
    %568 = vmatmul.mubr.bf16.gmra.mrb[0].mxu0 %v534
    %v569 = vpop.f32.mrb[0].mxu0
    %v570 = vadd.f32 0.0, %v569
    %v571 = vpop.f32.mrb[0].mxu0
    %v572 = vadd.f32 0.0, %v571
    %v573 = vpop.f32.mrb[0].mxu0
    %v574 = vpop.f32.mrb[0].mxu0
    %575 = vdwg.mxu0
    %576 = vmatprep.subr.bf16.mxu0 0
    %577 = vmatpush1.bf16.msra.mxu0 %v379
    %578 = vmatprep.subr.bf16.mxu0 0
    %579 = vmatpush1.bf16.msra.mxu0 %v382
    %580 = vmatprep.subr.bf16.mxu0 0
    %581 = vmatpush1.bf16.msra.mxu0 %v385
    %582 = vmatprep.subr.bf16.mxu0 0
    %583 = vmatpush1.bf16.msra.mxu0 %v388
    %584 = vmatprep.subr.bf16.mxu0 0
    %585 = vmatpush1.bf16.msra.mxu0 %v391
    %586 = vmatprep.subr.bf16.mxu0 0
    %587 = vmatpush1.bf16.msra.mxu0 %v394
    %588 = vmatprep.subr.bf16.mxu0 0
    %589 = vmatpush1.bf16.msra.mxu0 %v397
    %590 = vmatprep.subr.bf16.mxu0 0
    %591 = vmatpush1.bf16.msra.mxu0 %v400
    %592 = vmatprep.subr.bf16.mxu0 0
    %593 = vmatpush1.bf16.msra.mxu0 0
    %594 = vmatprep.subr.bf16.mxu0 0
    %595 = vmatpush1.bf16.msra.mxu0 0
    %596 = vmatprep.subr.bf16.mxu0 0
    %597 = vmatpush1.bf16.msra.mxu0 0
    %598 = vmatprep.subr.bf16.mxu0 0
    %599 = vmatpush1.bf16.msra.mxu0 0
    %600 = vmatprep.subr.bf16.mxu0 0
    %601 = vmatpush1.bf16.msra.mxu0 0
    %602 = vmatprep.subr.bf16.mxu0 0
    %603 = vmatpush1.bf16.msra.mxu0 0
    %604 = vmatprep.subr.bf16.mxu0 0
    %605 = vmatpush1.bf16.msra.mxu0 0
    %606 = vmatprep.subr.bf16.mxu0 0
    %607 = vmatpush1.bf16.msra.mxu0 0
    %608 = vmatprep.mubr.bf16.mxu0 0
    %609 = vmatmul.mubr.bf16.gmra.mrb[0].mxu0 %v534
    %v610 = vpop.f32.mrb[0].mxu0
    %v611 = vadd.f32 0.0, %v610
    %v612 = vpop.f32.mrb[0].mxu0
    %v613 = vpop.f32.mrb[0].mxu0
    %v614 = vpop.f32.mrb[0].mxu0
    %615 = vdwg.mxu0
    %v616 = vadd.f32 %v163, %v570
    %v617 = vxor.u32 %v616, 2147483648
    %v618 = vmul.f32 %v617, 1.442695
    %v619 = vpow.pop %v618
    %v620 = vadd.f32 %v619, 1.0
    %v621 = vrcp.pop %v620
    %v622 = vmul.f32 1.0, %v621
    %v623 = vadd.f32 %v165, %v572
    %v624 = vxor.u32 %v623, 2147483648
    %v625 = vmul.f32 %v624, 1.442695
    %v626 = vpow.pop %v625
    %v627 = vadd.f32 %v626, 1.0
    %v628 = vrcp.pop %v627
    %v629 = vmul.f32 1.0, %v628
    %v630 = vadd.f32 %v611, %v524
    %v631 = vmul.f32 %v622, %v630
    %v632 = vadd.f32 %v235, %v631
    %v633 = vtanh.pop %v632
    %v634 = vsub.f32 1.0, %v629
    %v635 = vmul.f32 %v634, %v633
    %v636 = vmul.f32 %v629, %v533
    %v637 = vadd.f32 %v635, %v636
    %v638 = vpack.c.bf16 %v637, %v637
    %639 = vmatprep.subr.bf16.mxu0 %v378
    %640 = vmatpush1.bf16.msra.mxu0 %v377
    %641 = vmatprep.subr.bf16.mxu0 %v381
    %642 = vmatpush1.bf16.msra.mxu0 %v380
    %643 = vmatprep.subr.bf16.mxu0 %v384
    %644 = vmatpush1.bf16.msra.mxu0 %v383
    %645 = vmatprep.subr.bf16.mxu0 %v387
    %646 = vmatpush1.bf16.msra.mxu0 %v386
    %647 = vmatprep.subr.bf16.mxu0 %v390
    %648 = vmatpush1.bf16.msra.mxu0 %v389
    %649 = vmatprep.subr.bf16.mxu0 %v393
    %650 = vmatpush1.bf16.msra.mxu0 %v392
    %651 = vmatprep.subr.bf16.mxu0 %v396
    %652 = vmatpush1.bf16.msra.mxu0 %v395
    %653 = vmatprep.subr.bf16.mxu0 %v399
    %654 = vmatpush1.bf16.msra.mxu0 %v398
    %655 = vmatprep.subr.bf16.mxu0 0
    %656 = vmatpush1.bf16.msra.mxu0 0
    %657 = vmatprep.subr.bf16.mxu0 0
    %658 = vmatpush1.bf16.msra.mxu0 0
    %659 = vmatprep.subr.bf16.mxu0 0
    %660 = vmatpush1.bf16.msra.mxu0 0
    %661 = vmatprep.subr.bf16.mxu0 0
    %662 = vmatpush1.bf16.msra.mxu0 0
    %663 = vmatprep.subr.bf16.mxu0 0
    %664 = vmatpush1.bf16.msra.mxu0 0
    %665 = vmatprep.subr.bf16.mxu0 0
    %666 = vmatpush1.bf16.msra.mxu0 0
    %667 = vmatprep.subr.bf16.mxu0 0
    %668 = vmatpush1.bf16.msra.mxu0 0
    %669 = vmatprep.subr.bf16.mxu0 0
    %670 = vmatpush1.bf16.msra.mxu0 0
    %671 = vmatprep.mubr.bf16.mxu0 0
    %672 = vmatmul.mubr.bf16.gmra.mrb[0].mxu0 %v638
    %v673 = vpop.f32.mrb[0].mxu0
    %v674 = vadd.f32 0.0, %v673
    %v675 = vpop.f32.mrb[0].mxu0
    %v676 = vadd.f32 0.0, %v675
    %v677 = vpop.f32.mrb[0].mxu0
    %v678 = vpop.f32.mrb[0].mxu0
    %679 = vdwg.mxu0
    %680 = vmatprep.subr.bf16.mxu0 0
    %681 = vmatpush1.bf16.msra.mxu0 %v379
    %682 = vmatprep.subr.bf16.mxu0 0
    %683 = vmatpush1.bf16.msra.mxu0 %v382
    %684 = vmatprep.subr.bf16.mxu0 0
    %685 = vmatpush1.bf16.msra.mxu0 %v385
    %686 = vmatprep.subr.bf16.mxu0 0
    %687 = vmatpush1.bf16.msra.mxu0 %v388
    %688 = vmatprep.subr.bf16.mxu0 0
    %689 = vmatpush1.bf16.msra.mxu0 %v391
    %690 = vmatprep.subr.bf16.mxu0 0
    %691 = vmatpush1.bf16.msra.mxu0 %v394
    %692 = vmatprep.subr.bf16.mxu0 0
    %693 = vmatpush1.bf16.msra.mxu0 %v397
    %694 = vmatprep.subr.bf16.mxu0 0
    %695 = vmatpush1.bf16.msra.mxu0 %v400
    %696 = vmatprep.subr.bf16.mxu0 0
    %697 = vmatpush1.bf16.msra.mxu0 0
    %698 = vmatprep.subr.bf16.mxu0 0
    %699 = vmatpush1.bf16.msra.mxu0 0
    %700 = vmatprep.subr.bf16.mxu0 0
    %701 = vmatpush1.bf16.msra.mxu0 0
    %702 = vmatprep.subr.bf16.mxu0 0
    %703 = vmatpush1.bf16.msra.mxu0 0
    %704 = vmatprep.subr.bf16.mxu0 0
    %705 = vmatpush1.bf16.msra.mxu0 0
    %706 = vmatprep.subr.bf16.mxu0 0
    %707 = vmatpush1.bf16.msra.mxu0 0
    %708 = vmatprep.subr.bf16.mxu0 0
    %709 = vmatpush1.bf16.msra.mxu0 0
    %710 = vmatprep.subr.bf16.mxu0 0
    %711 = vmatpush1.bf16.msra.mxu0 0
    %712 = vmatprep.mubr.bf16.mxu0 0
    %713 = vmatmul.mubr.bf16.gmra.mrb[0].mxu0 %v638
    %v714 = vpop.f32.mrb[0].mxu0
    %v715 = vadd.f32 0.0, %v714
    %v716 = vpop.f32.mrb[0].mxu0
    %v717 = vpop.f32.mrb[0].mxu0
    %v718 = vpop.f32.mrb[0].mxu0
    %719 = vdwg.mxu0
    %v720 = vadd.f32 %v169, %v674
    %v721 = vxor.u32 %v720, 2147483648
    %v722 = vmul.f32 %v721, 1.442695
    %v723 = vpow.pop %v722
    %v724 = vadd.f32 %v723, 1.0
    %v725 = vrcp.pop %v724
    %v726 = vmul.f32 1.0, %v725
    %v727 = vadd.f32 %v171, %v676
    %v728 = vxor.u32 %v727, 2147483648
    %v729 = vmul.f32 %v728, 1.442695
    %v730 = vpow.pop %v729
    %v731 = vadd.f32 %v730, 1.0
    %v732 = vrcp.pop %v731
    %v733 = vmul.f32 1.0, %v732
    %v734 = vadd.f32 %v715, %v524
    %v735 = vmul.f32 %v726, %v734
    %v736 = vadd.f32 %v240, %v735
    %v737 = vtanh.pop %v736
    %v738 = vsub.f32 1.0, %v733
    %v739 = vmul.f32 %v738, %v737
    %v740 = vmul.f32 %v733, %v637
    %v741 = vadd.f32 %v739, %v740
    %v742 = vpack.c.bf16 %v741, %v741
    %743 = vmatprep.subr.bf16.mxu0 %v378
    %744 = vmatpush1.bf16.msra.mxu0 %v377
    %745 = vmatprep.subr.bf16.mxu0 %v381
    %746 = vmatpush1.bf16.msra.mxu0 %v380
    %747 = vmatprep.subr.bf16.mxu0 %v384
    %748 = vmatpush1.bf16.msra.mxu0 %v383
    %749 = vmatprep.subr.bf16.mxu0 %v387
    %750 = vmatpush1.bf16.msra.mxu0 %v386
    %751 = vmatprep.subr.bf16.mxu0 %v390
    %752 = vmatpush1.bf16.msra.mxu0 %v389
    %753 = vmatprep.subr.bf16.mxu0 %v393
    %754 = vmatpush1.bf16.msra.mxu0 %v392
    %755 = vmatprep.subr.bf16.mxu0 %v396
    %756 = vmatpush1.bf16.msra.mxu0 %v395
    %757 = vmatprep.subr.bf16.mxu0 %v399
    %758 = vmatpush1.bf16.msra.mxu0 %v398
    %759 = vmatprep.subr.bf16.mxu0 0
    %760 = vmatpush1.bf16.msra.mxu0 0
    %761 = vmatprep.subr.bf16.mxu0 0
    %762 = vmatpush1.bf16.msra.mxu0 0
    %763 = vmatprep.subr.bf16.mxu0 0
    %764 = vmatpush1.bf16.msra.mxu0 0
    %765 = vmatprep.subr.bf16.mxu0 0
    %766 = vmatpush1.bf16.msra.mxu0 0
    %767 = vmatprep.subr.bf16.mxu0 0
    %768 = vmatpush1.bf16.msra.mxu0 0
    %769 = vmatprep.subr.bf16.mxu0 0
    %770 = vmatpush1.bf16.msra.mxu0 0
    %771 = vmatprep.subr.bf16.mxu0 0
    %772 = vmatpush1.bf16.msra.mxu0 0
    %773 = vmatprep.subr.bf16.mxu0 0
    %774 = vmatpush1.bf16.msra.mxu0 0
    %775 = vmatprep.mubr.bf16.mxu0 0
    %776 = vmatmul.mubr.bf16.gmra.mrb[0].mxu0 %v742
    %v777 = vpop.f32.mrb[0].mxu0
    %v778 = vadd.f32 0.0, %v777
    %v779 = vpop.f32.mrb[0].mxu0
    %v780 = vadd.f32 0.0, %v779
    %v781 = vpop.f32.mrb[0].mxu0
    %v782 = vpop.f32.mrb[0].mxu0
    %783 = vdwg.mxu0
    %784 = vmatprep.subr.bf16.mxu0 0
    %785 = vmatpush1.bf16.msra.mxu0 %v379
    %786 = vmatprep.subr.bf16.mxu0 0
    %787 = vmatpush1.bf16.msra.mxu0 %v382
    %788 = vmatprep.subr.bf16.mxu0 0
    %789 = vmatpush1.bf16.msra.mxu0 %v385
    %790 = vmatprep.subr.bf16.mxu0 0
    %791 = vmatpush1.bf16.msra.mxu0 %v388
    %792 = vmatprep.subr.bf16.mxu0 0
    %793 = vmatpush1.bf16.msra.mxu0 %v391
    %794 = vmatprep.subr.bf16.mxu0 0
    %795 = vmatpush1.bf16.msra.mxu0 %v394
    %796 = vmatprep.subr.bf16.mxu0 0
    %797 = vmatpush1.bf16.msra.mxu0 %v397
    %798 = vmatprep.subr.bf16.mxu0 0
    %799 = vmatpush1.bf16.msra.mxu0 %v400
    %800 = vmatprep.subr.bf16.mxu0 0
    %801 = vmatpush1.bf16.msra.mxu0 0
    %802 = vmatprep.subr.bf16.mxu0 0
    %803 = vmatpush1.bf16.msra.mxu0 0
    %804 = vmatprep.subr.bf16.mxu0 0
    %805 = vmatpush1.bf16.msra.mxu0 0
    %806 = vmatprep.subr.bf16.mxu0 0
    %807 = vmatpush1.bf16.msra.mxu0 0
    %808 = vmatprep.subr.bf16.mxu0 0
    %809 = vmatpush1.bf16.msra.mxu0 0
    %810 = vmatprep.subr.bf16.mxu0 0
    %811 = vmatpush1.bf16.msra.mxu0 0
    %812 = vmatprep.subr.bf16.mxu0 0
    %813 = vmatpush1.bf16.msra.mxu0 0
    %814 = vmatprep.subr.bf16.mxu0 0
    %815 = vmatpush1.bf16.msra.mxu0 0
    %816 = vmatprep.mubr.bf16.mxu0 0
    %817 = vmatmul.mubr.bf16.gmra.mrb[0].mxu0 %v742
    %v818 = vpop.f32.mrb[0].mxu0
    %v819 = vadd.f32 0.0, %v818
    %v820 = vpop.f32.mrb[0].mxu0
    %v821 = vpop.f32.mrb[0].mxu0
    %v822 = vpop.f32.mrb[0].mxu0
    %823 = vdwg.mxu0
    %v824 = vadd.f32 %v173, %v778
    %v825 = vxor.u32 %v824, 2147483648
    %v826 = vmul.f32 %v825, 1.442695
    %v827 = vpow.pop %v826
    %v828 = vadd.f32 %v827, 1.0
    %v829 = vrcp.pop %v828
    %v830 = vmul.f32 1.0, %v829
    %v831 = vadd.f32 %v175, %v780
    %v832 = vxor.u32 %v831, 2147483648
    %v833 = vmul.f32 %v832, 1.442695
    %v834 = vpow.pop %v833
    %v835 = vadd.f32 %v834, 1.0
    %v836 = vrcp.pop %v835
    %v837 = vmul.f32 1.0, %v836
    %v838 = vadd.f32 %v819, %v524
    %v839 = vmul.f32 %v830, %v838
    %v840 = vadd.f32 %v243, %v839
    %v841 = vtanh.pop %v840
    %v842 = vsub.f32 1.0, %v837
    %v843 = vmul.f32 %v842, %v841
    %v844 = vmul.f32 %v837, %v741
    %v845 = vadd.f32 %v843, %v844
    %v846 = vpack.c.bf16 %v845, %v845
    %847 = vmatprep.subr.bf16.mxu0 %v378
    %848 = vmatpush1.bf16.msra.mxu0 %v377
    %849 = vmatprep.subr.bf16.mxu0 %v381
    %850 = vmatpush1.bf16.msra.mxu0 %v380
    %851 = vmatprep.subr.bf16.mxu0 %v384
    %852 = vmatpush1.bf16.msra.mxu0 %v383
    %853 = vmatprep.subr.bf16.mxu0 %v387
    %854 = vmatpush1.bf16.msra.mxu0 %v386
    %855 = vmatprep.subr.bf16.mxu0 %v390
    %856 = vmatpush1.bf16.msra.mxu0 %v389
    %857 = vmatprep.subr.bf16.mxu0 %v393
    %858 = vmatpush1.bf16.msra.mxu0 %v392
    %859 = vmatprep.subr.bf16.mxu0 %v396
    %860 = vmatpush1.bf16.msra.mxu0 %v395
    %861 = vmatprep.subr.bf16.mxu0 %v399
    %862 = vmatpush1.bf16.msra.mxu0 %v398
    %863 = vmatprep.subr.bf16.mxu0 0
    %864 = vmatpush1.bf16.msra.mxu0 0
    %865 = vmatprep.subr.bf16.mxu0 0
    %866 = vmatpush1.bf16.msra.mxu0 0
    %867 = vmatprep.subr.bf16.mxu0 0
    %868 = vmatpush1.bf16.msra.mxu0 0
    %869 = vmatprep.subr.bf16.mxu0 0
    %870 = vmatpush1.bf16.msra.mxu0 0
    %871 = vmatprep.subr.bf16.mxu0 0
    %872 = vmatpush1.bf16.msra.mxu0 0
    %873 = vmatprep.subr.bf16.mxu0 0
    %874 = vmatpush1.bf16.msra.mxu0 0
    %875 = vmatprep.subr.bf16.mxu0 0
    %876 = vmatpush1.bf16.msra.mxu0 0
    %877 = vmatprep.subr.bf16.mxu0 0
    %878 = vmatpush1.bf16.msra.mxu0 0
    %879 = vmatprep.mubr.bf16.mxu0 0
    %880 = vmatmul.mubr.bf16.gmra.mrb[0].mxu0 %v846
    %v881 = vpop.f32.mrb[0].mxu0
    %v882 = vadd.f32 0.0, %v881
    %v883 = vpop.f32.mrb[0].mxu0
    %v884 = vadd.f32 0.0, %v883
    %v885 = vpop.f32.mrb[0].mxu0
    %v886 = vpop.f32.mrb[0].mxu0
    %887 = vdwg.mxu0
    %888 = vmatprep.subr.bf16.mxu0 0
    %889 = vmatpush1.bf16.msra.mxu0 %v379
    %890 = vmatprep.subr.bf16.mxu0 0
    %891 = vmatpush1.bf16.msra.mxu0 %v382
    %892 = vmatprep.subr.bf16.mxu0 0
    %893 = vmatpush1.bf16.msra.mxu0 %v385
    %894 = vmatprep.subr.bf16.mxu0 0
    %895 = vmatpush1.bf16.msra.mxu0 %v388
    %896 = vmatprep.subr.bf16.mxu0 0
    %897 = vmatpush1.bf16.msra.mxu0 %v391
    %898 = vmatprep.subr.bf16.mxu0 0
    %899 = vmatpush1.bf16.msra.mxu0 %v394
    %900 = vmatprep.subr.bf16.mxu0 0
    %901 = vmatpush1.bf16.msra.mxu0 %v397
    %902 = vmatprep.subr.bf16.mxu0 0
    %903 = vmatpush1.bf16.msra.mxu0 %v400
    %904 = vmatprep.subr.bf16.mxu0 0
    %905 = vmatpush1.bf16.msra.mxu0 0
    %906 = vmatprep.subr.bf16.mxu0 0
    %907 = vmatpush1.bf16.msra.mxu0 0
    %908 = vmatprep.subr.bf16.mxu0 0
    %909 = vmatpush1.bf16.msra.mxu0 0
    %910 = vmatprep.subr.bf16.mxu0 0
    %911 = vmatpush1.bf16.msra.mxu0 0
    %912 = vmatprep.subr.bf16.mxu0 0
    %913 = vmatpush1.bf16.msra.mxu0 0
    %914 = vmatprep.subr.bf16.mxu0 0
    %915 = vmatpush1.bf16.msra.mxu0 0
    %916 = vmatprep.subr.bf16.mxu0 0
    %917 = vmatpush1.bf16.msra.mxu0 0
    %918 = vmatprep.subr.bf16.mxu0 0
    %919 = vmatpush1.bf16.msra.mxu0 0
    %920 = vmatprep.mubr.bf16.mxu0 0
    %921 = vmatmul.mubr.bf16.gmra.mrb[0].mxu0 %v846
    %v922 = vpop.f32.mrb[0].mxu0
    %v923 = vadd.f32 0.0, %v922
    %v924 = vpop.f32.mrb[0].mxu0
    %v925 = vpop.f32.mrb[0].mxu0
    %v926 = vpop.f32.mrb[0].mxu0
    %927 = vdwg.mxu0
    %v928 = vadd.f32 %v179, %v882
    %v929 = vxor.u32 %v928, 2147483648
    %v930 = vmul.f32 %v929, 1.442695
    %v931 = vpow.pop %v930
    %v932 = vadd.f32 %v931, 1.0
    %v933 = vrcp.pop %v932
    %v934 = vmul.f32 1.0, %v933
    %v935 = vadd.f32 %v181, %v884
    %v936 = vxor.u32 %v935, 2147483648
    %v937 = vmul.f32 %v936, 1.442695
    %v938 = vpow.pop %v937
    %v939 = vadd.f32 %v938, 1.0
    %v940 = vrcp.pop %v939
    %v941 = vmul.f32 1.0, %v940
    %v942 = vadd.f32 %v923, %v524
    %v943 = vmul.f32 %v934, %v942
    %v944 = vadd.f32 %v248, %v943
    %v945 = vtanh.pop %v944
    %v946 = vsub.f32 1.0, %v941
    %v947 = vmul.f32 %v946, %v945
    %v948 = vmul.f32 %v941, %v845
    %v949 = vadd.f32 %v947, %v948
    %v950 = vpack.c.bf16 %v949, %v949
    %951 = vmatprep.subr.bf16.mxu0 %v378
    %952 = vmatpush1.bf16.msra.mxu0 %v377
    %953 = vmatprep.subr.bf16.mxu0 %v381
    %954 = vmatpush1.bf16.msra.mxu0 %v380
    %955 = vmatprep.subr.bf16.mxu0 %v384
    %956 = vmatpush1.bf16.msra.mxu0 %v383
    %957 = vmatprep.subr.bf16.mxu0 %v387
    %958 = vmatpush1.bf16.msra.mxu0 %v386
    %959 = vmatprep.subr.bf16.mxu0 %v390
    %960 = vmatpush1.bf16.msra.mxu0 %v389
    %961 = vmatprep.subr.bf16.mxu0 %v393
    %962 = vmatpush1.bf16.msra.mxu0 %v392
    %963 = vmatprep.subr.bf16.mxu0 %v396
    %964 = vmatpush1.bf16.msra.mxu0 %v395
    %965 = vmatprep.subr.bf16.mxu0 %v399
    %966 = vmatpush1.bf16.msra.mxu0 %v398
    %967 = vmatprep.subr.bf16.mxu0 0
    %968 = vmatpush1.bf16.msra.mxu0 0
    %969 = vmatprep.subr.bf16.mxu0 0
    %970 = vmatpush1.bf16.msra.mxu0 0
    %971 = vmatprep.subr.bf16.mxu0 0
    %972 = vmatpush1.bf16.msra.mxu0 0
    %973 = vmatprep.subr.bf16.mxu0 0
    %974 = vmatpush1.bf16.msra.mxu0 0
    %975 = vmatprep.subr.bf16.mxu0 0
    %976 = vmatpush1.bf16.msra.mxu0 0
    %977 = vmatprep.subr.bf16.mxu0 0
    %978 = vmatpush1.bf16.msra.mxu0 0
    %979 = vmatprep.subr.bf16.mxu0 0
    %980 = vmatpush1.bf16.msra.mxu0 0
    %981 = vmatprep.subr.bf16.mxu0 0
    %982 = vmatpush1.bf16.msra.mxu0 0
    %983 = vmatprep.mubr.bf16.mxu0 0
    %984 = vmatmul.mubr.bf16.gmra.mrb[0].mxu0 %v950
    %v985 = vpop.f32.mrb[0].mxu0
    %v986 = vadd.f32 0.0, %v985
    %v987 = vpop.f32.mrb[0].mxu0
    %v988 = vadd.f32 0.0, %v987
    %v989 = vpop.f32.mrb[0].mxu0
    %v990 = vpop.f32.mrb[0].mxu0
    %991 = vdwg.mxu0
    %992 = vmatprep.subr.bf16.mxu0 0
    %993 = vmatpush1.bf16.msra.mxu0 %v379
    %994 = vmatprep.subr.bf16.mxu0 0
    %995 = vmatpush1.bf16.msra.mxu0 %v382
    %996 = vmatprep.subr.bf16.mxu0 0
    %997 = vmatpush1.bf16.msra.mxu0 %v385
    %998 = vmatprep.subr.bf16.mxu0 0
    %999 = vmatpush1.bf16.msra.mxu0 %v388
    %1000 = vmatprep.subr.bf16.mxu0 0
    %1001 = vmatpush1.bf16.msra.mxu0 %v391
    %1002 = vmatprep.subr.bf16.mxu0 0
    %1003 = vmatpush1.bf16.msra.mxu0 %v394
    %1004 = vmatprep.subr.bf16.mxu0 0
    %1005 = vmatpush1.bf16.msra.mxu0 %v397
    %1006 = vmatprep.subr.bf16.mxu0 0
    %1007 = vmatpush1.bf16.msra.mxu0 %v400
    %1008 = vmatprep.subr.bf16.mxu0 0
    %1009 = vmatpush1.bf16.msra.mxu0 0
    %1010 = vmatprep.subr.bf16.mxu0 0
    %1011 = vmatpush1.bf16.msra.mxu0 0
    %1012 = vmatprep.subr.bf16.mxu0 0
    %1013 = vmatpush1.bf16.msra.mxu0 0
    %1014 = vmatprep.subr.bf16.mxu0 0
    %1015 = vmatpush1.bf16.msra.mxu0 0
    %1016 = vmatprep.subr.bf16.mxu0 0
    %1017 = vmatpush1.bf16.msra.mxu0 0
    %1018 = vmatprep.subr.bf16.mxu0 0
    %1019 = vmatpush1.bf16.msra.mxu0 0
    %1020 = vmatprep.subr.bf16.mxu0 0
    %1021 = vmatpush1.bf16.msra.mxu0 0
    %1022 = vmatprep.subr.bf16.mxu0 0
    %1023 = vmatpush1.bf16.msra.mxu0 0
    %1024 = vmatprep.mubr.bf16.mxu0 0
    %1025 = vmatmul.mubr.bf16.gmra.mrb[0].mxu0 %v950
    %v1026 = vpop.f32.mrb[0].mxu0
    %v1027 = vadd.f32 0.0, %v1026
    %v1028 = vpop.f32.mrb[0].mxu0
    %v1029 = vpop.f32.mrb[0].mxu0
    %v1030 = vpop.f32.mrb[0].mxu0
    %1031 = vdwg.mxu0
    %v1032 = vadd.f32 %v183, %v986
    %v1033 = vxor.u32 %v1032, 2147483648
    %v1034 = vmul.f32 %v1033, 1.442695
    %v1035 = vpow.pop %v1034
    %v1036 = vadd.f32 %v1035, 1.0
    %v1037 = vrcp.pop %v1036
    %v1038 = vmul.f32 1.0, %v1037
    %v1039 = vadd.f32 %v185, %v988
    %v1040 = vxor.u32 %v1039, 2147483648
    %v1041 = vmul.f32 %v1040, 1.442695
    %v1042 = vpow.pop %v1041
    %v1043 = vadd.f32 %v1042, 1.0
    %v1044 = vrcp.pop %v1043
    %v1045 = vmul.f32 1.0, %v1044
    %v1046 = vadd.f32 %v1027, %v524
    %v1047 = vmul.f32 %v1038, %v1046
    %v1048 = vadd.f32 %v251, %v1047
    %v1049 = vtanh.pop %v1048
    %v1050 = vsub.f32 1.0, %v1045
    %v1051 = vmul.f32 %v1050, %v1049
    %v1052 = vmul.f32 %v1045, %v949
    %v1053 = vadd.f32 %v1051, %v1052
    %v1054 = vpack.c.bf16 %v1053, %v1053
    %1055 = vmatprep.subr.bf16.mxu0 %v378
    %1056 = vmatpush1.bf16.msra.mxu0 %v377
    %1057 = vmatprep.subr.bf16.mxu0 %v381
    %1058 = vmatpush1.bf16.msra.mxu0 %v380
    %1059 = vmatprep.subr.bf16.mxu0 %v384
    %1060 = vmatpush1.bf16.msra.mxu0 %v383
    %1061 = vmatprep.subr.bf16.mxu0 %v387
    %1062 = vmatpush1.bf16.msra.mxu0 %v386
    %1063 = vmatprep.subr.bf16.mxu0 %v390
    %1064 = vmatpush1.bf16.msra.mxu0 %v389
    %1065 = vmatprep.subr.bf16.mxu0 %v393
    %1066 = vmatpush1.bf16.msra.mxu0 %v392
    %1067 = vmatprep.subr.bf16.mxu0 %v396
    %1068 = vmatpush1.bf16.msra.mxu0 %v395
    %1069 = vmatprep.subr.bf16.mxu0 %v399
    %1070 = vmatpush1.bf16.msra.mxu0 %v398
    %1071 = vmatprep.subr.bf16.mxu0 0
    %1072 = vmatpush1.bf16.msra.mxu0 0
    %1073 = vmatprep.subr.bf16.mxu0 0
    %1074 = vmatpush1.bf16.msra.mxu0 0
    %1075 = vmatprep.subr.bf16.mxu0 0
    %1076 = vmatpush1.bf16.msra.mxu0 0
    %1077 = vmatprep.subr.bf16.mxu0 0
    %1078 = vmatpush1.bf16.msra.mxu0 0
    %1079 = vmatprep.subr.bf16.mxu0 0
    %1080 = vmatpush1.bf16.msra.mxu0 0
    %1081 = vmatprep.subr.bf16.mxu0 0
    %1082 = vmatpush1.bf16.msra.mxu0 0
    %1083 = vmatprep.subr.bf16.mxu0 0
    %1084 = vmatpush1.bf16.msra.mxu0 0
    %1085 = vmatprep.subr.bf16.mxu0 0
    %1086 = vmatpush1.bf16.msra.mxu0 0
    %1087 = vmatprep.mubr.bf16.mxu0 0
    %1088 = vmatmul.mubr.bf16.gmra.mrb[0].mxu0 %v1054
    %v1089 = vpop.f32.mrb[0].mxu0
    %v1090 = vadd.f32 0.0, %v1089
    %v1091 = vpop.f32.mrb[0].mxu0
    %v1092 = vadd.f32 0.0, %v1091
    %v1093 = vpop.f32.mrb[0].mxu0
    %v1094 = vpop.f32.mrb[0].mxu0
    %1095 = vdwg.mxu0
    %1096 = vmatprep.subr.bf16.mxu0 0
    %1097 = vmatpush1.bf16.msra.mxu0 %v379
    %1098 = vmatprep.subr.bf16.mxu0 0
    %1099 = vmatpush1.bf16.msra.mxu0 %v382
    %1100 = vmatprep.subr.bf16.mxu0 0
    %1101 = vmatpush1.bf16.msra.mxu0 %v385
    %1102 = vmatprep.subr.bf16.mxu0 0
    %1103 = vmatpush1.bf16.msra.mxu0 %v388
    %1104 = vmatprep.subr.bf16.mxu0 0
    %1105 = vmatpush1.bf16.msra.mxu0 %v391
    %1106 = vmatprep.subr.bf16.mxu0 0
    %1107 = vmatpush1.bf16.msra.mxu0 %v394
    %1108 = vmatprep.subr.bf16.mxu0 0
    %1109 = vmatpush1.bf16.msra.mxu0 %v397
    %1110 = vmatprep.subr.bf16.mxu0 0
    %1111 = vmatpush1.bf16.msra.mxu0 %v400
    %1112 = vmatprep.subr.bf16.mxu0 0
    %1113 = vmatpush1.bf16.msra.mxu0 0
    %1114 = vmatprep.subr.bf16.mxu0 0
    %1115 = vmatpush1.bf16.msra.mxu0 0
    %1116 = vmatprep.subr.bf16.mxu0 0
    %1117 = vmatpush1.bf16.msra.mxu0 0
    %1118 = vmatprep.subr.bf16.mxu0 0
    %1119 = vmatpush1.bf16.msra.mxu0 0
    %1120 = vmatprep.subr.bf16.mxu0 0
    %1121 = vmatpush1.bf16.msra.mxu0 0
    %1122 = vmatprep.subr.bf16.mxu0 0
    %1123 = vmatpush1.bf16.msra.mxu0 0
    %1124 = vmatprep.subr.bf16.mxu0 0
    %1125 = vmatpush1.bf16.msra.mxu0 0
    %1126 = vmatprep.subr.bf16.mxu0 0
    %1127 = vmatpush1.bf16.msra.mxu0 0
    %1128 = vmatprep.mubr.bf16.mxu0 0
    %1129 = vmatmul.mubr.bf16.gmra.mrb[0].mxu0 %v1054
    %v1130 = vpop.f32.mrb[0].mxu0
    %v1131 = vadd.f32 0.0, %v1130
    %v1132 = vpop.f32.mrb[0].mxu0
    %v1133 = vpop.f32.mrb[0].mxu0
    %v1134 = vpop.f32.mrb[0].mxu0
    %1135 = vdwg.mxu0
    %v1136 = vadd.f32 %v189, %v1090
    %v1137 = vxor.u32 %v1136, 2147483648
    %v1138 = vmul.f32 %v1137, 1.442695
    %v1139 = vpow.pop %v1138
    %v1140 = vadd.f32 %v1139, 1.0
    %v1141 = vrcp.pop %v1140
    %v1142 = vmul.f32 1.0, %v1141
    %v1143 = vadd.f32 %v191, %v1092
    %v1144 = vxor.u32 %v1143, 2147483648
    %v1145 = vmul.f32 %v1144, 1.442695
    %v1146 = vpow.pop %v1145
    %v1147 = vadd.f32 %v1146, 1.0
    %v1148 = vrcp.pop %v1147
    %v1149 = vmul.f32 1.0, %v1148
    %v1150 = vadd.f32 %v1131, %v524
    %v1151 = vmul.f32 %v1142, %v1150
    %v1152 = vadd.f32 %v256, %v1151
    %v1153 = vtanh.pop %v1152
    %v1154 = vsub.f32 1.0, %v1149
    %v1155 = vmul.f32 %v1154, %v1153
    %v1156 = vmul.f32 %v1149, %v1053
    %v1157 = vadd.f32 %v1155, %v1156
    %v1158 = vpack.c.bf16 %v1157, %v1157
    %1159 = vmatprep.subr.bf16.mxu0 %v378
    %1160 = vmatpush1.bf16.msra.mxu0 %v377
    %1161 = vmatprep.subr.bf16.mxu0 %v381
    %1162 = vmatpush1.bf16.msra.mxu0 %v380
    %1163 = vmatprep.subr.bf16.mxu0 %v384
    %1164 = vmatpush1.bf16.msra.mxu0 %v383
    %1165 = vmatprep.subr.bf16.mxu0 %v387
    %1166 = vmatpush1.bf16.msra.mxu0 %v386
    %1167 = vmatprep.subr.bf16.mxu0 %v390
    %1168 = vmatpush1.bf16.msra.mxu0 %v389
    %1169 = vmatprep.subr.bf16.mxu0 %v393
    %1170 = vmatpush1.bf16.msra.mxu0 %v392
    %1171 = vmatprep.subr.bf16.mxu0 %v396
    %1172 = vmatpush1.bf16.msra.mxu0 %v395
    %1173 = vmatprep.subr.bf16.mxu0 %v399
    %1174 = vmatpush1.bf16.msra.mxu0 %v398
    %1175 = vmatprep.subr.bf16.mxu0 0
    %1176 = vmatpush1.bf16.msra.mxu0 0
    %1177 = vmatprep.subr.bf16.mxu0 0
    %1178 = vmatpush1.bf16.msra.mxu0 0
    %1179 = vmatprep.subr.bf16.mxu0 0
    %1180 = vmatpush1.bf16.msra.mxu0 0
    %1181 = vmatprep.subr.bf16.mxu0 0
    %1182 = vmatpush1.bf16.msra.mxu0 0
    %1183 = vmatprep.subr.bf16.mxu0 0
    %1184 = vmatpush1.bf16.msra.mxu0 0
    %1185 = vmatprep.subr.bf16.mxu0 0
    %1186 = vmatpush1.bf16.msra.mxu0 0
    %1187 = vmatprep.subr.bf16.mxu0 0
    %1188 = vmatpush1.bf16.msra.mxu0 0
    %1189 = vmatprep.subr.bf16.mxu0 0
    %1190 = vmatpush1.bf16.msra.mxu0 0
    %1191 = vmatprep.mubr.bf16.mxu0 0
    %1192 = vmatmul.mubr.bf16.gmra.mrb[0].mxu0 %v1158
    %v1193 = vpop.f32.mrb[0].mxu0
    %v1194 = vadd.f32 0.0, %v1193
    %v1195 = vpop.f32.mrb[0].mxu0
    %v1196 = vadd.f32 0.0, %v1195
    %v1197 = vpop.f32.mrb[0].mxu0
    %v1198 = vpop.f32.mrb[0].mxu0
    %1199 = vdwg.mxu0
    %1200 = vmatprep.subr.bf16.mxu0 0
    %1201 = vmatpush1.bf16.msra.mxu0 %v379
    %1202 = vmatprep.subr.bf16.mxu0 0
    %1203 = vmatpush1.bf16.msra.mxu0 %v382
    %1204 = vmatprep.subr.bf16.mxu0 0
    %1205 = vmatpush1.bf16.msra.mxu0 %v385
    %1206 = vmatprep.subr.bf16.mxu0 0
    %1207 = vmatpush1.bf16.msra.mxu0 %v388
    %1208 = vmatprep.subr.bf16.mxu0 0
    %1209 = vmatpush1.bf16.msra.mxu0 %v391
    %1210 = vmatprep.subr.bf16.mxu0 0
    %1211 = vmatpush1.bf16.msra.mxu0 %v394
    %1212 = vmatprep.subr.bf16.mxu0 0
    %1213 = vmatpush1.bf16.msra.mxu0 %v397
    %1214 = vmatprep.subr.bf16.mxu0 0
    %1215 = vmatpush1.bf16.msra.mxu0 %v400
    %1216 = vmatprep.subr.bf16.mxu0 0
    %1217 = vmatpush1.bf16.msra.mxu0 0
    %1218 = vmatprep.subr.bf16.mxu0 0
    %1219 = vmatpush1.bf16.msra.mxu0 0
    %1220 = vmatprep.subr.bf16.mxu0 0
    %1221 = vmatpush1.bf16.msra.mxu0 0
    %1222 = vmatprep.subr.bf16.mxu0 0
    %1223 = vmatpush1.bf16.msra.mxu0 0
    %1224 = vmatprep.subr.bf16.mxu0 0
    %1225 = vmatpush1.bf16.msra.mxu0 0
    %1226 = vmatprep.subr.bf16.mxu0 0
    %1227 = vmatpush1.bf16.msra.mxu0 0
    %1228 = vmatprep.subr.bf16.mxu0 0
    %1229 = vmatpush1.bf16.msra.mxu0 0
    %1230 = vmatprep.subr.bf16.mxu0 0
    %1231 = vmatpush1.bf16.msra.mxu0 0
    %1232 = vmatprep.mubr.bf16.mxu0 0
    %1233 = vmatmul.mubr.bf16.gmra.mrb[0].mxu0 %v1158
    %v1234 = vpop.f32.mrb[0].mxu0
    %v1235 = vadd.f32 0.0, %v1234
    %v1236 = vpop.f32.mrb[0].mxu0
    %v1237 = vpop.f32.mrb[0].mxu0
    %v1238 = vpop.f32.mrb[0].mxu0
    %1239 = vdwg.mxu0
    %v1240 = vadd.f32 %v193, %v1194
    %v1241 = vxor.u32 %v1240, 2147483648
    %v1242 = vmul.f32 %v1241, 1.442695
    %v1243 = vpow.pop %v1242
    %v1244 = vadd.f32 %v1243, 1.0
    %v1245 = vrcp.pop %v1244
    %v1246 = vmul.f32 1.0, %v1245
    %v1247 = vadd.f32 %v195, %v1196
    %v1248 = vxor.u32 %v1247, 2147483648
    %v1249 = vmul.f32 %v1248, 1.442695
    %v1250 = vpow.pop %v1249
    %v1251 = vadd.f32 %v1250, 1.0
    %v1252 = vrcp.pop %v1251
    %v1253 = vmul.f32 1.0, %v1252
    %v1254 = vadd.f32 %v1235, %v524
    %v1255 = vmul.f32 %v1246, %v1254
    %v1256 = vadd.f32 %v259, %v1255
    %v1257 = vtanh.pop %v1256
    %v1258 = vsub.f32 1.0, %v1253
    %v1259 = vmul.f32 %v1258, %v1257
    %v1260 = vmul.f32 %v1253, %v1157
    %v1261 = vadd.f32 %v1259, %v1260
    %1262 = vst [vmem:[#allocation2] sm:$0xff] %v1261
    // Predicated region
    $region38: #{tpu_custom_call.1} parent=1 // pred_check
      %p1263 = pneg %p41
    $region39: #{tpu_custom_call.1} parent=1 // pred_check_branch
      %1265 = sbr.rel (%p1263) target = $region41
    $region40: #{tpu_custom_call.1} parent=1 // pred_region
      %v1266 = vpack.c.bf16 %v1261, %v1261
      %v1267 = vld [vmem:[%s5] sm:$0xf]
      %v1268 = vld [vmem:[%s5 + $0x4] sm:$0xf]
      %v1269 = vld [vmem:[%s5 + $0x8] sm:$0xf]
      %v1270 = vld [vmem:[%s5 + $0xc] sm:$0xf]
      %v1271 = vld [vmem:[%s5 + $0x10] sm:$0xf]
      %v1272 = vld [vmem:[%s5 + $0x14] sm:$0xf]
      %v1273 = vld [vmem:[%s5 + $0x18] sm:$0xf]
      %v1274 = vld [vmem:[%s5 + $0x1c] sm:$0xf]
      %v1275 = vld [vmem:[%s5 + $0x20] sm:$0xf]
      %v1276 = vld [vmem:[%s5 + $0x24] sm:$0xf]
      %v1277 = vld [vmem:[%s5 + $0x28] sm:$0xf]
      %v1278 = vld [vmem:[%s5 + $0x2c] sm:$0xf]
      %v1279 = vld [vmem:[%s5 + $0x30] sm:$0xf]
      %v1280 = vld [vmem:[%s5 + $0x34] sm:$0xf]
      %v1281 = vld [vmem:[%s5 + $0x38] sm:$0xf]
      %v1282 = vld [vmem:[%s5 + $0x3c] sm:$0xf]
      %v1283 = vld [vmem:[%s6] sm:$0x1]
      %v1285 = vlaneseq
      %v1286 = vshrl.u32 %v1285, 7
      %v1287 = vsub.s32 0, %v1286
      %v1288 = vrot.slane %v1283, %v1287
      %v1306 = vunpack.c.l.b16 %v1267
      %v1307 = vunpack.c.l.b16 %v1268
      %v1308 = vunpack.c.l.b16 %v1269
      %v1309 = vunpack.c.l.b16 %v1270
      %v1310 = vunpack.c.l.b16 %v1271
      %v1311 = vunpack.c.l.b16 %v1272
      %v1312 = vunpack.c.l.b16 %v1273
      %v1313 = vunpack.c.l.b16 %v1274
      %v1314 = vunpack.c.l.b16 %v1275
      %v1315 = vunpack.c.l.b16 %v1276
      %v1316 = vunpack.c.l.b16 %v1277
      %v1317 = vunpack.c.l.b16 %v1278
      %v1318 = vunpack.c.l.b16 %v1279
      %v1319 = vunpack.c.l.b16 %v1280
      %v1320 = vunpack.c.l.b16 %v1281
      %v1321 = vunpack.c.l.b16 %v1282
      %v1322 = vpack.c.b16 %v1307, %v1306
      %v1323 = vpack.c.b16 %v1309, %v1308
      %v1324 = vpack.c.b16 %v1311, %v1310
      %v1325 = vpack.c.b16 %v1313, %v1312
      %v1326 = vpack.c.b16 %v1315, %v1314
      %v1327 = vpack.c.b16 %v1317, %v1316
      %v1328 = vpack.c.b16 %v1319, %v1318
      %v1329 = vpack.c.b16 %v1321, %v1320
      %1338 = vmatprep.subr.bf16.mxu0 0
      %1339 = vmatpush1.bf16.msra.mxu0 %v1322
      %1340 = vmatprep.subr.bf16.mxu0 0
      %1341 = vmatpush1.bf16.msra.mxu0 %v1323
      %1342 = vmatprep.subr.bf16.mxu0 0
      %1343 = vmatpush1.bf16.msra.mxu0 %v1324
      %1344 = vmatprep.subr.bf16.mxu0 0
      %1345 = vmatpush1.bf16.msra.mxu0 %v1325
      %1346 = vmatprep.subr.bf16.mxu0 0
      %1347 = vmatpush1.bf16.msra.mxu0 %v1326
      %1348 = vmatprep.subr.bf16.mxu0 0
      %1349 = vmatpush1.bf16.msra.mxu0 %v1327
      %1350 = vmatprep.subr.bf16.mxu0 0
      %1351 = vmatpush1.bf16.msra.mxu0 %v1328
      %1352 = vmatprep.subr.bf16.mxu0 0
      %1353 = vmatpush1.bf16.msra.mxu0 %v1329
      %1354 = vmatprep.subr.bf16.mxu0 0
      %1355 = vmatpush1.bf16.msra.mxu0 0
      %1356 = vmatprep.subr.bf16.mxu0 0
      %1357 = vmatpush1.bf16.msra.mxu0 0
      %1358 = vmatprep.subr.bf16.mxu0 0
      %1359 = vmatpush1.bf16.msra.mxu0 0
      %1360 = vmatprep.subr.bf16.mxu0 0
      %1361 = vmatpush1.bf16.msra.mxu0 0
      %1362 = vmatprep.subr.bf16.mxu0 0
      %1363 = vmatpush1.bf16.msra.mxu0 0
      %1364 = vmatprep.subr.bf16.mxu0 0
      %1365 = vmatpush1.bf16.msra.mxu0 0
      %1366 = vmatprep.subr.bf16.mxu0 0
      %1367 = vmatpush1.bf16.msra.mxu0 0
      %1368 = vmatprep.subr.bf16.mxu0 0
      %1369 = vmatpush1.bf16.msra.mxu0 0
      %1370 = vmatprep.mubr.bf16.mxu0 0
      %1371 = vmatmul.mubr.bf16.gmra.mrb[0].mxu0 %v1266
      %v1372 = vpop.f32.mrb[0].mxu0
      %v1373 = vadd.f32 %v1288, %v1372
      %v1374 = vpop.f32.mrb[0].mxu0
      %v1375 = vpop.f32.mrb[0].mxu0
      %v1376 = vpop.f32.mrb[0].mxu0
      %1377 = vdwg.mxu0
      %vm1378 = vcmask 31744
      %1379 = vst.msk [vmem:[%s7] sm:$0xff] %vm1378, %v1373
    $region41: #{tpu_custom_call.1} parent=1 // pred_fallthru
      _
    // Predicated region
    $region42: #{tpu_custom_call.1} parent=1 // pred_check
      _
    $region43: #{tpu_custom_call.1} parent=1 // pred_check_branch
      %1381 = sbr.rel (0) target = $region45
    $region44: #{tpu_custom_call.1} parent=1 // pred_region
      _
    $region45: #{tpu_custom_call.1} parent=1 // pred_fallthru
      _
    // Predicated region
    $region46: #{tpu_custom_call.1} parent=1 // pred_check
      _
    $region47: #{tpu_custom_call.1} parent=1 // pred_check_branch
      %1383 = sbr.rel (0) target = $region49
    $region48: #{tpu_custom_call.1} parent=1 // pred_region
      _
    $region49: #{tpu_custom_call.1} parent=1 // pred_fallthru
      _
    %1384 = vsyncpa [#allocation4], 1

</llo_original>
